<compile_context>
chip_gen: v6e
topology: v6e:2x2x1
jax: 0.10.0
libtpu: 0.0.40
codegen_flags: <defaults>
</compile_context>

<pallas_src>
import jax
import jax.numpy as jnp
from jax.experimental import pallas as pl
from jax.experimental.pallas import tpu as pltpu

# ----------------------------------------------------------------------------
# Model hyper-parameters (small stand-ins for the pretrained backbones).
# TODO(synk): T5ForConditionalGeneration('flan-t5-xxl') and ImageBindModel are
# pretrained backbones with no clean Pallas equivalent; they are replaced by
# tiny deterministic stand-in encoders producing features with the same
# shapes/axis conventions ([B, d_model] and [B, output_features]).
# ----------------------------------------------------------------------------
VOCAB = 100
D_MODEL = 32          # stand-in for text_model.config.d_model
IMG_FEAT = 32         # stand-in for image_model.output_features
C_IN = 4              # image channels
HIDDEN = 512          # fc output size (from the module)
OUT = 256             # output_layer size (from the module)


# ----------------------------------------------------------------------------
# Pallas kernel: fused fc + output_layer (image pooling/projection and the
# concat are pre-folded into w1/b1, see fuse_params()).
# ----------------------------------------------------------------------------
def mlp_kernel(z_ref, w1_ref, b1_ref, w2_ref, b2_ref, out_ref):
    """z:(Bp,Kf) bf16, w1:(Kf,HIDDEN) bf16, b1:(1,HIDDEN) f32,
    w2:(HIDDEN,OUT) bf16, b2:(1,OUT) f32, out:(Bp,OUT) f32."""
    x = (
        jnp.dot(z_ref[...], w1_ref[...], preferred_element_type=jnp.float32)
        + b1_ref[...]
    )                                                              # (Bp, HIDDEN) f32
    out_ref[...] = (
        jnp.dot(x.astype(w2_ref.dtype), w2_ref[...],
                preferred_element_type=jnp.float32)
        + b2_ref[...]
    )                                                              # (Bp, OUT) f32


def _full_spec(shape):
    # Whole-array block (dims equal full array dims -> (8,128) rule satisfied).
    return pl.BlockSpec(shape, lambda: tuple(0 for _ in shape))


# ----------------------------------------------------------------------------
# Parameter fusion (done once, outside the forward pass)
# ----------------------------------------------------------------------------
def fuse_params(params, img_shape):
    """Fold image mean-pool + projection and the feature concat into fc."""
    C, H, W = img_shape
    hw = H * W
    w1_text = params["w1"][:D_MODEL]                    # (D_MODEL, HIDDEN)
    w1_img = params["w1"][D_MODEL:]                     # (IMG_FEAT, HIDDEN)
    # Mean-pool over H*W expressed as a matmul weight (no XLU reduction).
    w_pool = jnp.repeat(params["w_img"], hw, axis=0) / hw   # (C*HW, IMG_FEAT)
    w_img_head = w_pool @ w1_img                            # (C*HW, HIDDEN)
    w1_fused = jnp.concatenate([w1_text, w_img_head], axis=0)  # (D_MODEL+C*HW, HIDDEN)
    b1_eff = params["b1"] + params["b_img"] @ w1_img            # (1, HIDDEN)
    return {
        "emb": params["emb"].astype(jnp.float32),
        "w1": w1_fused.astype(jnp.bfloat16),
        "b1": b1_eff.astype(jnp.float32),
        "w2": params["w2"].astype(jnp.bfloat16),
        "b2": params["b2"].astype(jnp.float32),
    }


# ----------------------------------------------------------------------------
# Forward pass
# ----------------------------------------------------------------------------
def multimodal_forward(fused, input_ids, attention_mask, image_tensors):
    # TODO(synk): attention_mask only affects the (untranslatable) T5 internals.
    del attention_mask
    B = input_ids.shape[0]
    C, H, W = image_tensors.shape[1:]

    # Text stand-in: token-0 embedding lookup (mirrors last_hidden_state[:, 0, :]).
    text_feat = jnp.take(fused["emb"], input_ids[:, 0], axis=0)      # (B, D_MODEL)
    img2d = image_tensors.reshape(B, C * H * W)                      # (B, C*HW)

    # Single activation slab; concat is folded into one K=1056 MXU matmul.
    z = jnp.concatenate([text_feat, img2d], axis=1).astype(jnp.bfloat16)

    # Pad batch to a sublane multiple (8) -> unmasked stores, sliced back below.
    bp = max(8, 8 * pl.cdiv(B, 8))
    if bp != B:
        z = jnp.pad(z, ((0, bp - B), (0, 0)))
    kf = z.shape[1]

    out = pl.pallas_call(
        mlp_kernel,
        out_shape=jax.ShapeDtypeStruct((bp, OUT), jnp.float32),
        in_specs=[
            _full_spec((bp, kf)),
            _full_spec((kf, HIDDEN)),
            _full_spec((1, HIDDEN)),
            _full_spec((HIDDEN, OUT)),
            _full_spec((1, OUT)),
        ],
        out_specs=_full_spec((bp, OUT)),
        compiler_params=pltpu.CompilerParams(vmem_limit_bytes=32 * 1024 * 1024),
    )(z, fused["w1"], fused["b1"], fused["w2"], fused["b2"])
    return out[:B]


# ----------------------------------------------------------------------------
# Deterministic parameter init (module-shaped weights; fused afterwards)
# ----------------------------------------------------------------------------
def init_params(key):
    ks = jax.random.split(key, 6)
    scale = 0.02
    return {
        "emb": scale * jax.random.normal(ks[0], (VOCAB, D_MODEL), jnp.float32),
        "w_img": scale * jax.random.normal(ks[1], (C_IN, IMG_FEAT), jnp.float32),
        "b_img": jnp.zeros((1, IMG_FEAT), jnp.float32),
        # fc: Linear(D_MODEL + IMG_FEAT, 512)
        "w1": scale * jax.random.normal(ks[2], (D_MODEL + IMG_FEAT, HIDDEN), jnp.float32),
        "b1": scale * jax.random.normal(ks[3], (1, HIDDEN), jnp.float32),
        # output_layer: Linear(512, 256)
        "w2": scale * jax.random.normal(ks[4], (HIDDEN, OUT), jnp.float32),
        "b2": scale * jax.random.normal(ks[5], (1, OUT), jnp.float32),
    }


if __name__ == "__main__":
    key = jax.random.PRNGKey(0)
    k_param, k_ids, k_img = jax.random.split(key, 3)

    params = init_params(k_param)

    B, S, H, W = 2, 8, 16, 16
    fused = fuse_params(params, (C_IN, H, W))

    input_ids = jax.random.randint(k_ids, (B, S), 0, VOCAB, dtype=jnp.int32)
    attention_mask = jnp.ones((B, S), dtype=jnp.int32)
    image_tensors = jax.random.normal(k_img, (B, C_IN, H, W), jnp.float32)

    fwd = jax.jit(multimodal_forward)
    out = fwd(fused, input_ids, attention_mask, image_tensors)
    out = jax.block_until_ready(out)
    assert out.shape == (B, OUT) and out.dtype == jnp.float32
    print("KERNEL_OK")
</pallas_src>

<mosaic_0001>
module attributes {stable_mosaic.version = 11 : i64} {
  func.func @mlp_kernel(%arg0: memref<8x1056xbf16, #tpu.memory_space<vmem>>, %arg1: memref<1056x512xbf16, #tpu.memory_space<vmem>>, %arg2: memref<1x512xf32, #tpu.memory_space<vmem>>, %arg3: memref<512x256xbf16, #tpu.memory_space<vmem>>, %arg4: memref<1x256xf32, #tpu.memory_space<vmem>>, %arg5: memref<8x256xf32, #tpu.memory_space<vmem>>) attributes {dimension_semantics = [], scalar_prefetch = 0 : i64, scratch_operands = 0 : i64, tpu.core_type = #tpu.core_type<tc>} {
    %c0 = arith.constant 0 : index
    %c0_0 = arith.constant 0 : index
    %0 = vector.load %arg0[%c0, %c0_0] : memref<8x1056xbf16, #tpu.memory_space<vmem>>, vector<8x1056xbf16>
    %c0_1 = arith.constant 0 : index
    %c0_2 = arith.constant 0 : index
    %1 = vector.load %arg1[%c0_1, %c0_2] : memref<1056x512xbf16, #tpu.memory_space<vmem>>, vector<1056x512xbf16>
    %cst = arith.constant dense<0.000000e+00> : vector<8x512xf32>
    %2 = tpu.matmul %0, %1, %cst {dimension_numbers = #tpu.dot_dimension_numbers<[1], [0], [0], [1], [0, 0, 1, 1], [], []>} : vector<8x1056xbf16>, vector<1056x512xbf16>, vector<8x512xf32> -> vector<8x512xf32>
    %c0_3 = arith.constant 0 : index
    %c0_4 = arith.constant 0 : index
    %3 = vector.load %arg2[%c0_3, %c0_4] : memref<1x512xf32, #tpu.memory_space<vmem>>, vector<1x512xf32>
    %4 = vector.broadcast %3 : vector<1x512xf32> to vector<8x512xf32>
    %5 = arith.addf %2, %4 : vector<8x512xf32>
    %6 = arith.truncf %5 : vector<8x512xf32> to vector<8x512xbf16>
    %c0_5 = arith.constant 0 : index
    %c0_6 = arith.constant 0 : index
    %7 = vector.load %arg3[%c0_5, %c0_6] : memref<512x256xbf16, #tpu.memory_space<vmem>>, vector<512x256xbf16>
    %cst_7 = arith.constant dense<0.000000e+00> : vector<8x256xf32>
    %8 = tpu.matmul %6, %7, %cst_7 {dimension_numbers = #tpu.dot_dimension_numbers<[1], [0], [0], [1], [0, 0, 1, 1], [], []>} : vector<8x512xbf16>, vector<512x256xbf16>, vector<8x256xf32> -> vector<8x256xf32>
    %c0_8 = arith.constant 0 : index
    %c0_9 = arith.constant 0 : index
    %9 = vector.load %arg4[%c0_8, %c0_9] : memref<1x256xf32, #tpu.memory_space<vmem>>, vector<1x256xf32>
    %10 = vector.broadcast %9 : vector<1x256xf32> to vector<8x256xf32>
    %11 = arith.addf %8, %10 : vector<8x256xf32>
    %c0_10 = arith.constant 0 : index
    %c0_11 = arith.constant 0 : index
    %12 = vector.load %arg5[%c0_10, %c0_11] : memref<8x256xf32, #tpu.memory_space<vmem>>, vector<8x256xf32>
    tpu.vector_store %arg5[%c0_10, %c0_11], %11 {strides = array<i32>} : memref<8x256xf32, #tpu.memory_space<vmem>>, vector<8x256xf32>,
    return
  }
}

</mosaic_0001>

<llo_original>
// kernel: multimodal_forward.1
$region0: #{multimodal_forward.1}
  #allocation0 [shape = 'u32[]', space=smem, size = 0x4, offset = 0x4, fixed_abs, tag = 'smem constant byte address 0x4 - core index']
  #allocation1 [shape = 'u32[144,128]{1,0:T(1,128)}', space=vmem, size = 0x12000, scoped, tag = 'internal scratch']
  %s0 = inlined_call_operand.vmem [shape: bf16[8,1056], index: 0, kind: input, shape index: {}]
  %s1 = inlined_call_operand.hbm [shape: bf16[1056,512], index: 1, kind: input, shape index: {}]
  %s2 = inlined_call_operand.hbm [shape: f32[1,512], index: 2, kind: input, shape index: {}]
  %s3 = inlined_call_operand.hbm [shape: bf16[512,256], index: 3, kind: input, shape index: {}]
  %s4 = inlined_call_operand.hbm [shape: f32[1,256], index: 4, kind: input, shape index: {}]
  %s5 = inlined_call_operand.vmem [shape: f32[8,256], index: 5, kind: output, shape index: {}]
  %s6 = sld [smem:[#allocation0]]
  $region46: #{multimodal_forward.1} parent=0
    _
  %s8 = ssub.s32 1, %s6
  %s9 = scalar_select 0, %s8, %s6
  $region1: #{multimodal_forward.1} parent=0
    #allocation2 [shape = 'u8[1081344]{0}', space=vmem, size = 0x108000, scoped, tag = 'input window, operand 1, single buffered']
    #allocation3 [shape = 's32[1]{0}', space=sflag, size = 0x4, scoped, tag = 'scoped memory for multimodal_forward.1']
    #allocation4 [shape = 'u8[2048]{0}', space=vmem, size = 0x800, scoped, tag = 'input window, operand 2, single buffered']
    #allocation5 [shape = 's32[1]{0}', space=sflag, size = 0x4, scoped, tag = 'scoped memory for multimodal_forward.1']
    #allocation6 [shape = 'u8[262144]{0}', space=vmem, size = 0x40000, scoped, tag = 'input window, operand 3, single buffered']
    #allocation7 [shape = 'u8[1024]{0}', space=vmem, size = 0x400, scoped, tag = 'input window, operand 4, single buffered']
    #allocation8 [shape = 's32[1]{0}', space=sflag, size = 0x4, scoped, tag = 'scoped memory for multimodal_forward.1']
    %10 = vsyncpa [#allocation3], 0
    %11 = vsyncpa [#allocation5], 0
    %12 = vsyncpa [#allocation8], 0
    // Predicated region
    $region2: #{multimodal_forward.1} parent=1 // pred_check
      _
    $region3: #{multimodal_forward.1} parent=1 // pred_check_branch
      %14 = sbr.rel (0) target = $region5
    $region4: #{multimodal_forward.1} parent=1 // pred_region
      _
    $region5: #{multimodal_forward.1} parent=1 // pred_fallthru
      _
    // Predicated region
    $region6: #{multimodal_forward.1} parent=1 // pred_check
      _
    $region7: #{multimodal_forward.1} parent=1 // pred_check_branch
      %16 = sbr.rel (0) target = $region9
    $region8: #{multimodal_forward.1} parent=1 // pred_region
      %s18 = ssub.s32 33792, 33792
      %19 = vsyncadd [#allocation3], %s18
      %s20 = sshll.u32 [#allocation2], 4
      %s21 = int_to_ptr.vmem [resolvable:$true] %s20
      %26 = dma.hbm_to_vmem [thread:$0]  %s1, 33792, %s21, [#allocation3], 256, 256, 16
    $region9: #{multimodal_forward.1} parent=1 // pred_fallthru
      _
    // Predicated region
    $region10: #{multimodal_forward.1} parent=1 // pred_check
      _
    $region11: #{multimodal_forward.1} parent=1 // pred_check_branch
      %28 = sbr.rel (0) target = $region13
    $region12: #{multimodal_forward.1} parent=1 // pred_region
      %s30 = ssub.s32 64, 64
      %31 = vsyncadd [#allocation5], %s30
      %s33 = sshll.u32 [#allocation4], 4
      %s34 = int_to_ptr.vmem [resolvable:$true] %s33
      %36 = dma.hbm_to_vmem [thread:$0]  %s2, 64, %s34, [#allocation5]
    $region13: #{multimodal_forward.1} parent=1 // pred_fallthru
      _
    // Predicated region
    $region14: #{multimodal_forward.1} parent=1 // pred_check
      _
    $region15: #{multimodal_forward.1} parent=1 // pred_check_branch
      %38 = sbr.rel (0) target = $region17
    $region16: #{multimodal_forward.1} parent=1 // pred_region
      %s40 = ssub.s32 8192, 8192
      %41 = vsyncadd [#allocation5], %s40
      %s42 = sshll.u32 [#allocation6], 4
      %s43 = int_to_ptr.vmem [resolvable:$true] %s42
      %48 = dma.hbm_to_vmem [thread:$0]  %s3, 8192, %s43, [#allocation5], 128, 128, 8
    $region17: #{multimodal_forward.1} parent=1 // pred_fallthru
      _
    // Predicated region
    $region18: #{multimodal_forward.1} parent=1 // pred_check
      _
    $region19: #{multimodal_forward.1} parent=1 // pred_check_branch
      %50 = sbr.rel (0) target = $region21
    $region20: #{multimodal_forward.1} parent=1 // pred_region
      %s52 = ssub.s32 32, 32
      %53 = vsyncadd [#allocation8], %s52
      %s55 = sshll.u32 [#allocation7], 4
      %s56 = int_to_ptr.vmem [resolvable:$true] %s55
      %58 = dma.hbm_to_vmem [thread:$0]  %s4, 32, %s56, [#allocation8]
    $region21: #{multimodal_forward.1} parent=1 // pred_fallthru
      _
    // Predicated region
    $region22: #{multimodal_forward.1} parent=1 // pred_check
      _
    $region23: #{multimodal_forward.1} parent=1 // pred_check_branch
      %60 = sbr.rel (0) target = $region25
    $region24: #{multimodal_forward.1} parent=1 // pred_region
      %61 = dma.done [#allocation3], 33792
    $region25: #{multimodal_forward.1} parent=1 // pred_fallthru
      _
    // Predicated region
    $region26: #{multimodal_forward.1} parent=1 // pred_check
      _
    $region27: #{multimodal_forward.1} parent=1 // pred_check_branch
      %63 = sbr.rel (0) target = $region29
    $region28: #{multimodal_forward.1} parent=1 // pred_region
      %64 = dma.done [#allocation5], 64
    $region29: #{multimodal_forward.1} parent=1 // pred_fallthru
      _
    // Predicated region
    $region30: #{multimodal_forward.1} parent=1 // pred_check
      _
    $region31: #{multimodal_forward.1} parent=1 // pred_check_branch
      %66 = sbr.rel (0) target = $region33
    $region32: #{multimodal_forward.1} parent=1 // pred_region
      %67 = dma.done [#allocation5], 8192
    $region33: #{multimodal_forward.1} parent=1 // pred_fallthru
      _
    // Predicated region
    $region34: #{multimodal_forward.1} parent=1 // pred_check
      _
    $region35: #{multimodal_forward.1} parent=1 // pred_check_branch
      %69 = sbr.rel (0) target = $region37
    $region36: #{multimodal_forward.1} parent=1 // pred_region
      %70 = dma.done [#allocation8], 32
    $region37: #{multimodal_forward.1} parent=1 // pred_fallthru
      _
    %v72 = vld [vmem:[%s0] sm:$0xff]
    %v73 = vld [vmem:[%s0 + $0x8] sm:$0xff]
    %v74 = vld [vmem:[%s0 + $0x10] sm:$0xff]
    %v75 = vld [vmem:[%s0 + $0x18] sm:$0xff]
    %v76 = vld [vmem:[%s0 + $0x20] sm:$0xf]
    %v77 = vld [vmem:[#allocation2] sm:$0xff]
    %v78 = vld [vmem:[#allocation2 + $0x8] sm:$0xff]
    %v79 = vld [vmem:[#allocation2 + $0x10] sm:$0xff]
    %v80 = vld [vmem:[#allocation2 + $0x18] sm:$0xff]
    %v81 = vld [vmem:[#allocation2 + $0x20] sm:$0xff]
    %v82 = vld [vmem:[#allocation2 + $0x28] sm:$0xff]
    %v83 = vld [vmem:[#allocation2 + $0x30] sm:$0xff]
    %v84 = vld [vmem:[#allocation2 + $0x38] sm:$0xff]
    %v85 = vld [vmem:[#allocation2 + $0x40] sm:$0xff]
    %v86 = vld [vmem:[#allocation2 + $0x48] sm:$0xff]
    %v87 = vld [vmem:[#allocation2 + $0x50] sm:$0xff]
    %v88 = vld [vmem:[#allocation2 + $0x58] sm:$0xff]
    %v89 = vld [vmem:[#allocation2 + $0x60] sm:$0xff]
    %v90 = vld [vmem:[#allocation2 + $0x68] sm:$0xff]
    %v91 = vld [vmem:[#allocation2 + $0x70] sm:$0xff]
    %v92 = vld [vmem:[#allocation2 + $0x78] sm:$0xff]
    %v93 = vld [vmem:[#allocation2 + $0x80] sm:$0xff]
    %v94 = vld [vmem:[#allocation2 + $0x88] sm:$0xff]
    %v95 = vld [vmem:[#allocation2 + $0x90] sm:$0xff]
    %v96 = vld [vmem:[#allocation2 + $0x98] sm:$0xff]
    %v97 = vld [vmem:[#allocation2 + $0xa0] sm:$0xff]
    %v98 = vld [vmem:[#allocation2 + $0xa8] sm:$0xff]
    %v99 = vld [vmem:[#allocation2 + $0xb0] sm:$0xff]
    %v100 = vld [vmem:[#allocation2 + $0xb8] sm:$0xff]
    %v101 = vld [vmem:[#allocation2 + $0xc0] sm:$0xff]
    %v102 = vld [vmem:[#allocation2 + $0xc8] sm:$0xff]
    %v103 = vld [vmem:[#allocation2 + $0xd0] sm:$0xff]
    %v104 = vld [vmem:[#allocation2 + $0xd8] sm:$0xff]
    %v105 = vld [vmem:[#allocation2 + $0xe0] sm:$0xff]
    %v106 = vld [vmem:[#allocation2 + $0xe8] sm:$0xff]
    %v107 = vld [vmem:[#allocation2 + $0xf0] sm:$0xff]
    %v108 = vld [vmem:[#allocation2 + $0xf8] sm:$0xff]
    %v109 = vld [vmem:[#allocation2 + $0x100] sm:$0xff]
    %v110 = vld [vmem:[#allocation2 + $0x108] sm:$0xff]
    %v111 = vld [vmem:[#allocation2 + $0x110] sm:$0xff]
    %v112 = vld [vmem:[#allocation2 + $0x118] sm:$0xff]
    %v113 = vld [vmem:[#allocation2 + $0x120] sm:$0xff]
    %v114 = vld [vmem:[#allocation2 + $0x128] sm:$0xff]
    %v115 = vld [vmem:[#allocation2 + $0x130] sm:$0xff]
    %v116 = vld [vmem:[#allocation2 + $0x138] sm:$0xff]
    %v117 = vld [vmem:[#allocation2 + $0x140] sm:$0xff]
    %v118 = vld [vmem:[#allocation2 + $0x148] sm:$0xff]
    %v119 = vld [vmem:[#allocation2 + $0x150] sm:$0xff]
    %v120 = vld [vmem:[#allocation2 + $0x158] sm:$0xff]
    %v121 = vld [vmem:[#allocation2 + $0x160] sm:$0xff]
    %v122 = vld [vmem:[#allocation2 + $0x168] sm:$0xff]
    %v123 = vld [vmem:[#allocation2 + $0x170] sm:$0xff]
    %v124 = vld [vmem:[#allocation2 + $0x178] sm:$0xff]
    %v125 = vld [vmem:[#allocation2 + $0x180] sm:$0xff]
    %v126 = vld [vmem:[#allocation2 + $0x188] sm:$0xff]
    %v127 = vld [vmem:[#allocation2 + $0x190] sm:$0xff]
    %v128 = vld [vmem:[#allocation2 + $0x198] sm:$0xff]
    %v129 = vld [vmem:[#allocation2 + $0x1a0] sm:$0xff]
    %v130 = vld [vmem:[#allocation2 + $0x1a8] sm:$0xff]
    %v131 = vld [vmem:[#allocation2 + $0x1b0] sm:$0xff]
    %v132 = vld [vmem:[#allocation2 + $0x1b8] sm:$0xff]
    %v133 = vld [vmem:[#allocation2 + $0x1c0] sm:$0xff]
    %v134 = vld [vmem:[#allocation2 + $0x1c8] sm:$0xff]
    %v135 = vld [vmem:[#allocation2 + $0x1d0] sm:$0xff]
    %v136 = vld [vmem:[#allocation2 + $0x1d8] sm:$0xff]
    %v137 = vld [vmem:[#allocation2 + $0x1e0] sm:$0xff]
    %v138 = vld [vmem:[#allocation2 + $0x1e8] sm:$0xff]
    %v139 = vld [vmem:[#allocation2 + $0x1f0] sm:$0xff]
    %v140 = vld [vmem:[#allocation2 + $0x1f8] sm:$0xff]
    %v141 = vld [vmem:[#allocation2 + $0x200] sm:$0xff]
    %v142 = vld [vmem:[#allocation2 + $0x208] sm:$0xff]
    %v143 = vld [vmem:[#allocation2 + $0x210] sm:$0xff]
    %v144 = vld [vmem:[#allocation2 + $0x218] sm:$0xff]
    %v145 = vld [vmem:[#allocation2 + $0x220] sm:$0xff]
    %v146 = vld [vmem:[#allocation2 + $0x228] sm:$0xff]
    %v147 = vld [vmem:[#allocation2 + $0x230] sm:$0xff]
    %v148 = vld [vmem:[#allocation2 + $0x238] sm:$0xff]
    %v149 = vld [vmem:[#allocation2 + $0x240] sm:$0xff]
    %v150 = vld [vmem:[#allocation2 + $0x248] sm:$0xff]
    %v151 = vld [vmem:[#allocation2 + $0x250] sm:$0xff]
    %v152 = vld [vmem:[#allocation2 + $0x258] sm:$0xff]
    %v153 = vld [vmem:[#allocation2 + $0x260] sm:$0xff]
    %v154 = vld [vmem:[#allocation2 + $0x268] sm:$0xff]
    %v155 = vld [vmem:[#allocation2 + $0x270] sm:$0xff]
    %v156 = vld [vmem:[#allocation2 + $0x278] sm:$0xff]
    %v157 = vld [vmem:[#allocation2 + $0x280] sm:$0xff]
    %v158 = vld [vmem:[#allocation2 + $0x288] sm:$0xff]
    %v159 = vld [vmem:[#allocation2 + $0x290] sm:$0xff]
    %v160 = vld [vmem:[#allocation2 + $0x298] sm:$0xff]
    %v161 = vld [vmem:[#allocation2 + $0x2a0] sm:$0xff]
    %v162 = vld [vmem:[#allocation2 + $0x2a8] sm:$0xff]
    %v163 = vld [vmem:[#allocation2 + $0x2b0] sm:$0xff]
    %v164 = vld [vmem:[#allocation2 + $0x2b8] sm:$0xff]
    %v165 = vld [vmem:[#allocation2 + $0x2c0] sm:$0xff]
    %v166 = vld [vmem:[#allocation2 + $0x2c8] sm:$0xff]
    %v167 = vld [vmem:[#allocation2 + $0x2d0] sm:$0xff]
    %v168 = vld [vmem:[#allocation2 + $0x2d8] sm:$0xff]
    %v169 = vld [vmem:[#allocation2 + $0x2e0] sm:$0xff]
    %v170 = vld [vmem:[#allocation2 + $0x2e8] sm:$0xff]
    %v171 = vld [vmem:[#allocation2 + $0x2f0] sm:$0xff]
    %v172 = vld [vmem:[#allocation2 + $0x2f8] sm:$0xff]
    %v173 = vld [vmem:[#allocation2 + $0x300] sm:$0xff]
    %v174 = vld [vmem:[#allocation2 + $0x308] sm:$0xff]
    %v175 = vld [vmem:[#allocation2 + $0x310] sm:$0xff]
    %v176 = vld [vmem:[#allocation2 + $0x318] sm:$0xff]
    %v177 = vld [vmem:[#allocation2 + $0x320] sm:$0xff]
    %v178 = vld [vmem:[#allocation2 + $0x328] sm:$0xff]
    %v179 = vld [vmem:[#allocation2 + $0x330] sm:$0xff]
    %v180 = vld [vmem:[#allocation2 + $0x338] sm:$0xff]
    %v181 = vld [vmem:[#allocation2 + $0x340] sm:$0xff]
    %v182 = vld [vmem:[#allocation2 + $0x348] sm:$0xff]
    %v183 = vld [vmem:[#allocation2 + $0x350] sm:$0xff]
    %v184 = vld [vmem:[#allocation2 + $0x358] sm:$0xff]
    %v185 = vld [vmem:[#allocation2 + $0x360] sm:$0xff]
    %v186 = vld [vmem:[#allocation2 + $0x368] sm:$0xff]
    %v187 = vld [vmem:[#allocation2 + $0x370] sm:$0xff]
    %v188 = vld [vmem:[#allocation2 + $0x378] sm:$0xff]
    %v189 = vld [vmem:[#allocation2 + $0x380] sm:$0xff]
    %v190 = vld [vmem:[#allocation2 + $0x388] sm:$0xff]
    %v191 = vld [vmem:[#allocation2 + $0x390] sm:$0xff]
    %v192 = vld [vmem:[#allocation2 + $0x398] sm:$0xff]
    %v193 = vld [vmem:[#allocation2 + $0x3a0] sm:$0xff]
    %v194 = vld [vmem:[#allocation2 + $0x3a8] sm:$0xff]
    %v195 = vld [vmem:[#allocation2 + $0x3b0] sm:$0xff]
    %v196 = vld [vmem:[#allocation2 + $0x3b8] sm:$0xff]
    %v197 = vld [vmem:[#allocation2 + $0x3c0] sm:$0xff]
    %v198 = vld [vmem:[#allocation2 + $0x3c8] sm:$0xff]
    %v199 = vld [vmem:[#allocation2 + $0x3d0] sm:$0xff]
    %v200 = vld [vmem:[#allocation2 + $0x3d8] sm:$0xff]
    %v201 = vld [vmem:[#allocation2 + $0x3e0] sm:$0xff]
    %v202 = vld [vmem:[#allocation2 + $0x3e8] sm:$0xff]
    %v203 = vld [vmem:[#allocation2 + $0x3f0] sm:$0xff]
    %v204 = vld [vmem:[#allocation2 + $0x3f8] sm:$0xff]
    %v205 = vld [vmem:[#allocation2 + $0x400] sm:$0xff]
    %v206 = vld [vmem:[#allocation2 + $0x408] sm:$0xff]
    %v207 = vld [vmem:[#allocation2 + $0x410] sm:$0xff]
    %v208 = vld [vmem:[#allocation2 + $0x418] sm:$0xff]
    %v209 = vld [vmem:[#allocation2 + $0x420] sm:$0xff]
    %v210 = vld [vmem:[#allocation2 + $0x428] sm:$0xff]
    %v211 = vld [vmem:[#allocation2 + $0x430] sm:$0xff]
    %v212 = vld [vmem:[#allocation2 + $0x438] sm:$0xff]
    %v213 = vld [vmem:[#allocation2 + $0x440] sm:$0xff]
    %v214 = vld [vmem:[#allocation2 + $0x448] sm:$0xff]
    %v215 = vld [vmem:[#allocation2 + $0x450] sm:$0xff]
    %v216 = vld [vmem:[#allocation2 + $0x458] sm:$0xff]
    %v217 = vld [vmem:[#allocation2 + $0x460] sm:$0xff]
    %v218 = vld [vmem:[#allocation2 + $0x468] sm:$0xff]
    %v219 = vld [vmem:[#allocation2 + $0x470] sm:$0xff]
    %v220 = vld [vmem:[#allocation2 + $0x478] sm:$0xff]
    %v221 = vld [vmem:[#allocation2 + $0x480] sm:$0xff]
    %v222 = vld [vmem:[#allocation2 + $0x488] sm:$0xff]
    %v223 = vld [vmem:[#allocation2 + $0x490] sm:$0xff]
    %v224 = vld [vmem:[#allocation2 + $0x498] sm:$0xff]
    %v225 = vld [vmem:[#allocation2 + $0x4a0] sm:$0xff]
    %v226 = vld [vmem:[#allocation2 + $0x4a8] sm:$0xff]
    %v227 = vld [vmem:[#allocation2 + $0x4b0] sm:$0xff]
    %v228 = vld [vmem:[#allocation2 + $0x4b8] sm:$0xff]
    %v229 = vld [vmem:[#allocation2 + $0x4c0] sm:$0xff]
    %v230 = vld [vmem:[#allocation2 + $0x4c8] sm:$0xff]
    %v231 = vld [vmem:[#allocation2 + $0x4d0] sm:$0xff]
    %v232 = vld [vmem:[#allocation2 + $0x4d8] sm:$0xff]
    %v233 = vld [vmem:[#allocation2 + $0x4e0] sm:$0xff]
    %v234 = vld [vmem:[#allocation2 + $0x4e8] sm:$0xff]
    %v235 = vld [vmem:[#allocation2 + $0x4f0] sm:$0xff]
    %v236 = vld [vmem:[#allocation2 + $0x4f8] sm:$0xff]
    %v237 = vld [vmem:[#allocation2 + $0x500] sm:$0xff]
    %v238 = vld [vmem:[#allocation2 + $0x508] sm:$0xff]
    %v239 = vld [vmem:[#allocation2 + $0x510] sm:$0xff]
    %v240 = vld [vmem:[#allocation2 + $0x518] sm:$0xff]
    %v241 = vld [vmem:[#allocation2 + $0x520] sm:$0xff]
    %v242 = vld [vmem:[#allocation2 + $0x528] sm:$0xff]
    %v243 = vld [vmem:[#allocation2 + $0x530] sm:$0xff]
    %v244 = vld [vmem:[#allocation2 + $0x538] sm:$0xff]
    %v245 = vld [vmem:[#allocation2 + $0x540] sm:$0xff]
    %v246 = vld [vmem:[#allocation2 + $0x548] sm:$0xff]
    %v247 = vld [vmem:[#allocation2 + $0x550] sm:$0xff]
    %v248 = vld [vmem:[#allocation2 + $0x558] sm:$0xff]
    %v249 = vld [vmem:[#allocation2 + $0x560] sm:$0xff]
    %v250 = vld [vmem:[#allocation2 + $0x568] sm:$0xff]
    %v251 = vld [vmem:[#allocation2 + $0x570] sm:$0xff]
    %v252 = vld [vmem:[#allocation2 + $0x578] sm:$0xff]
    %v253 = vld [vmem:[#allocation2 + $0x580] sm:$0xff]
    %v254 = vld [vmem:[#allocation2 + $0x588] sm:$0xff]
    %v255 = vld [vmem:[#allocation2 + $0x590] sm:$0xff]
    %v256 = vld [vmem:[#allocation2 + $0x598] sm:$0xff]
    %v257 = vld [vmem:[#allocation2 + $0x5a0] sm:$0xff]
    %v258 = vld [vmem:[#allocation2 + $0x5a8] sm:$0xff]
    %v259 = vld [vmem:[#allocation2 + $0x5b0] sm:$0xff]
    %v260 = vld [vmem:[#allocation2 + $0x5b8] sm:$0xff]
    %v261 = vld [vmem:[#allocation2 + $0x5c0] sm:$0xff]
    %v262 = vld [vmem:[#allocation2 + $0x5c8] sm:$0xff]
    %v263 = vld [vmem:[#allocation2 + $0x5d0] sm:$0xff]
    %v264 = vld [vmem:[#allocation2 + $0x5d8] sm:$0xff]
    %v265 = vld [vmem:[#allocation2 + $0x5e0] sm:$0xff]
    %v266 = vld [vmem:[#allocation2 + $0x5e8] sm:$0xff]
    %v267 = vld [vmem:[#allocation2 + $0x5f0] sm:$0xff]
    %v268 = vld [vmem:[#allocation2 + $0x5f8] sm:$0xff]
    %v269 = vld [vmem:[#allocation2 + $0x600] sm:$0xff]
    %v270 = vld [vmem:[#allocation2 + $0x608] sm:$0xff]
    %v271 = vld [vmem:[#allocation2 + $0x610] sm:$0xff]
    %v272 = vld [vmem:[#allocation2 + $0x618] sm:$0xff]
    %v273 = vld [vmem:[#allocation2 + $0x620] sm:$0xff]
    %v274 = vld [vmem:[#allocation2 + $0x628] sm:$0xff]
    %v275 = vld [vmem:[#allocation2 + $0x630] sm:$0xff]
    %v276 = vld [vmem:[#allocation2 + $0x638] sm:$0xff]
    %v277 = vld [vmem:[#allocation2 + $0x640] sm:$0xff]
    %v278 = vld [vmem:[#allocation2 + $0x648] sm:$0xff]
    %v279 = vld [vmem:[#allocation2 + $0x650] sm:$0xff]
    %v280 = vld [vmem:[#allocation2 + $0x658] sm:$0xff]
    %v281 = vld [vmem:[#allocation2 + $0x660] sm:$0xff]
    %v282 = vld [vmem:[#allocation2 + $0x668] sm:$0xff]
    %v283 = vld [vmem:[#allocation2 + $0x670] sm:$0xff]
    %v284 = vld [vmem:[#allocation2 + $0x678] sm:$0xff]
    %v285 = vld [vmem:[#allocation2 + $0x680] sm:$0xff]
    %v286 = vld [vmem:[#allocation2 + $0x688] sm:$0xff]
    %v287 = vld [vmem:[#allocation2 + $0x690] sm:$0xff]
    %v288 = vld [vmem:[#allocation2 + $0x698] sm:$0xff]
    %v289 = vld [vmem:[#allocation2 + $0x6a0] sm:$0xff]
    %v290 = vld [vmem:[#allocation2 + $0x6a8] sm:$0xff]
    %v291 = vld [vmem:[#allocation2 + $0x6b0] sm:$0xff]
    %v292 = vld [vmem:[#allocation2 + $0x6b8] sm:$0xff]
    %v293 = vld [vmem:[#allocation2 + $0x6c0] sm:$0xff]
    %v294 = vld [vmem:[#allocation2 + $0x6c8] sm:$0xff]
    %v295 = vld [vmem:[#allocation2 + $0x6d0] sm:$0xff]
    %v296 = vld [vmem:[#allocation2 + $0x6d8] sm:$0xff]
    %v297 = vld [vmem:[#allocation2 + $0x6e0] sm:$0xff]
    %v298 = vld [vmem:[#allocation2 + $0x6e8] sm:$0xff]
    %v299 = vld [vmem:[#allocation2 + $0x6f0] sm:$0xff]
    %v300 = vld [vmem:[#allocation2 + $0x6f8] sm:$0xff]
    %v301 = vld [vmem:[#allocation2 + $0x700] sm:$0xff]
    %v302 = vld [vmem:[#allocation2 + $0x708] sm:$0xff]
    %v303 = vld [vmem:[#allocation2 + $0x710] sm:$0xff]
    %v304 = vld [vmem:[#allocation2 + $0x718] sm:$0xff]
    %v305 = vld [vmem:[#allocation2 + $0x720] sm:$0xff]
    %v306 = vld [vmem:[#allocation2 + $0x728] sm:$0xff]
    %v307 = vld [vmem:[#allocation2 + $0x730] sm:$0xff]
    %v308 = vld [vmem:[#allocation2 + $0x738] sm:$0xff]
    %v309 = vld [vmem:[#allocation2 + $0x740] sm:$0xff]
    %v310 = vld [vmem:[#allocation2 + $0x748] sm:$0xff]
    %v311 = vld [vmem:[#allocation2 + $0x750] sm:$0xff]
    %v312 = vld [vmem:[#allocation2 + $0x758] sm:$0xff]
    %v313 = vld [vmem:[#allocation2 + $0x760] sm:$0xff]
    %v314 = vld [vmem:[#allocation2 + $0x768] sm:$0xff]
    %v315 = vld [vmem:[#allocation2 + $0x770] sm:$0xff]
    %v316 = vld [vmem:[#allocation2 + $0x778] sm:$0xff]
    %v317 = vld [vmem:[#allocation2 + $0x780] sm:$0xff]
    %v318 = vld [vmem:[#allocation2 + $0x788] sm:$0xff]
    %v319 = vld [vmem:[#allocation2 + $0x790] sm:$0xff]
    %v320 = vld [vmem:[#allocation2 + $0x798] sm:$0xff]
    %v321 = vld [vmem:[#allocation2 + $0x7a0] sm:$0xff]
    %v322 = vld [vmem:[#allocation2 + $0x7a8] sm:$0xff]
    %v323 = vld [vmem:[#allocation2 + $0x7b0] sm:$0xff]
    %v324 = vld [vmem:[#allocation2 + $0x7b8] sm:$0xff]
    %v325 = vld [vmem:[#allocation2 + $0x7c0] sm:$0xff]
    %v326 = vld [vmem:[#allocation2 + $0x7c8] sm:$0xff]
    %v327 = vld [vmem:[#allocation2 + $0x7d0] sm:$0xff]
    %v328 = vld [vmem:[#allocation2 + $0x7d8] sm:$0xff]
    %v329 = vld [vmem:[#allocation2 + $0x7e0] sm:$0xff]
    %v330 = vld [vmem:[#allocation2 + $0x7e8] sm:$0xff]
    %v331 = vld [vmem:[#allocation2 + $0x7f0] sm:$0xff]
    %v332 = vld [vmem:[#allocation2 + $0x7f8] sm:$0xff]
    %v333 = vld [vmem:[#allocation2 + $0x800] sm:$0xff]
    %v334 = vld [vmem:[#allocation2 + $0x808] sm:$0xff]
    %v335 = vld [vmem:[#allocation2 + $0x810] sm:$0xff]
    %v336 = vld [vmem:[#allocation2 + $0x818] sm:$0xff]
    %v337 = vld [vmem:[#allocation2 + $0x820] sm:$0xff]
    %v338 = vld [vmem:[#allocation2 + $0x828] sm:$0xff]
    %v339 = vld [vmem:[#allocation2 + $0x830] sm:$0xff]
    %v340 = vld [vmem:[#allocation2 + $0x838] sm:$0xff]
    %v341 = vld [vmem:[#allocation4] sm:$0xf]
    %v343 = vlaneseq
    %v344 = vshrl.u32 %v343, 7
    %v345 = vsub.s32 0, %v344
    %v346 = vrot.slane %v341, %v345
    %v347 = vlaneseq
    %v348 = vshrl.u32 %v347, 7
    %v349 = vsub.s32 1, %v348
    %v350 = vrot.slane %v341, %v349
    %v351 = vlaneseq
    %v352 = vshrl.u32 %v351, 7
    %v353 = vsub.s32 2, %v352
    %v354 = vrot.slane %v341, %v353
    %v355 = vlaneseq
    %v356 = vshrl.u32 %v355, 7
    %v357 = vsub.s32 3, %v356
    %v358 = vrot.slane %v341, %v357
    %v368 = vunpack.c.l.b16 %v72
    %v369 = vunpack.c.h.b16 %v72
    %v370 = vunpack.c.l.b16 %v73
    %v371 = vunpack.c.h.b16 %v73
    %v372 = vunpack.c.l.b16 %v74
    %v373 = vunpack.c.h.b16 %v74
    %v374 = vunpack.c.l.b16 %v75
    %v375 = vunpack.c.h.b16 %v75
    %v376 = vunpack.c.l.b16 %v76
    %v377 = vpack.c.b16 %v368, %v368
    %v378 = vpack.c.b16 %v369, %v369
    %v379 = vpack.c.b16 %v370, %v370
    %v380 = vpack.c.b16 %v371, %v371
    %v381 = vpack.c.b16 %v372, %v372
    %v382 = vpack.c.b16 %v373, %v373
    %v383 = vpack.c.b16 %v374, %v374
    %v384 = vpack.c.b16 %v375, %v375
    %v385 = vpack.c.b16 %v376, %v376
    %v658 = vunpack.c.l.b16 %v77
    %v659 = vunpack.c.h.b16 %v77
    %v660 = vunpack.c.l.b16 %v78
    %v661 = vunpack.c.h.b16 %v78
    %v662 = vunpack.c.l.b16 %v79
    %v663 = vunpack.c.h.b16 %v79
    %v664 = vunpack.c.l.b16 %v80
    %v665 = vunpack.c.h.b16 %v80
    %v666 = vunpack.c.l.b16 %v81
    %v667 = vunpack.c.h.b16 %v81
    %v668 = vunpack.c.l.b16 %v82
    %v669 = vunpack.c.h.b16 %v82
    %v670 = vunpack.c.l.b16 %v83
    %v671 = vunpack.c.h.b16 %v83
    %v672 = vunpack.c.l.b16 %v84
    %v673 = vunpack.c.h.b16 %v84
    %v674 = vunpack.c.l.b16 %v85
    %v675 = vunpack.c.h.b16 %v85
    %v676 = vunpack.c.l.b16 %v86
    %v677 = vunpack.c.h.b16 %v86
    %v678 = vunpack.c.l.b16 %v87
    %v679 = vunpack.c.h.b16 %v87
    %v680 = vunpack.c.l.b16 %v88
    %v681 = vunpack.c.h.b16 %v88
    %v682 = vunpack.c.l.b16 %v89
    %v683 = vunpack.c.h.b16 %v89
    %v684 = vunpack.c.l.b16 %v90
    %v685 = vunpack.c.h.b16 %v90
    %v686 = vunpack.c.l.b16 %v91
    %v687 = vunpack.c.h.b16 %v91
    %v688 = vunpack.c.l.b16 %v92
    %v689 = vunpack.c.h.b16 %v92
    %v690 = vunpack.c.l.b16 %v93
    %v691 = vunpack.c.h.b16 %v93
    %v692 = vunpack.c.l.b16 %v94
    %v693 = vunpack.c.h.b16 %v94
    %v694 = vunpack.c.l.b16 %v95
    %v695 = vunpack.c.h.b16 %v95
    %v696 = vunpack.c.l.b16 %v96
    %v697 = vunpack.c.h.b16 %v96
    %v698 = vunpack.c.l.b16 %v97
    %v699 = vunpack.c.h.b16 %v97
    %v700 = vunpack.c.l.b16 %v98
    %v701 = vunpack.c.h.b16 %v98
    %v702 = vunpack.c.l.b16 %v99
    %v703 = vunpack.c.h.b16 %v99
    %v704 = vunpack.c.l.b16 %v100
    %v705 = vunpack.c.h.b16 %v100
    %v706 = vunpack.c.l.b16 %v101
    %v707 = vunpack.c.h.b16 %v101
    %v708 = vunpack.c.l.b16 %v102
    %v709 = vunpack.c.h.b16 %v102
    %v710 = vunpack.c.l.b16 %v103
    %v711 = vunpack.c.h.b16 %v103
    %v712 = vunpack.c.l.b16 %v104
    %v713 = vunpack.c.h.b16 %v104
    %v714 = vunpack.c.l.b16 %v105
    %v715 = vunpack.c.h.b16 %v105
    %v716 = vunpack.c.l.b16 %v106
    %v717 = vunpack.c.h.b16 %v106
    %v718 = vunpack.c.l.b16 %v107
    %v719 = vunpack.c.h.b16 %v107
    %v720 = vunpack.c.l.b16 %v108
    %v721 = vunpack.c.h.b16 %v108
    %v722 = vunpack.c.l.b16 %v109
    %v723 = vunpack.c.h.b16 %v109
    %v724 = vunpack.c.l.b16 %v110
    %v725 = vunpack.c.h.b16 %v110
    %v726 = vunpack.c.l.b16 %v111
    %v727 = vunpack.c.h.b16 %v111
    %v728 = vunpack.c.l.b16 %v112
    %v729 = vunpack.c.h.b16 %v112
    %v730 = vunpack.c.l.b16 %v113
    %v731 = vunpack.c.h.b16 %v113
    %v732 = vunpack.c.l.b16 %v114
    %v733 = vunpack.c.h.b16 %v114
    %v734 = vunpack.c.l.b16 %v115
    %v735 = vunpack.c.h.b16 %v115
    %v736 = vunpack.c.l.b16 %v116
    %v737 = vunpack.c.h.b16 %v116
    %v738 = vunpack.c.l.b16 %v117
    %v739 = vunpack.c.h.b16 %v117
    %v740 = vunpack.c.l.b16 %v118
    %v741 = vunpack.c.h.b16 %v118
    %v742 = vunpack.c.l.b16 %v119
    %v743 = vunpack.c.h.b16 %v119
    %v744 = vunpack.c.l.b16 %v120
    %v745 = vunpack.c.h.b16 %v120
    %v746 = vunpack.c.l.b16 %v121
    %v747 = vunpack.c.h.b16 %v121
    %v748 = vunpack.c.l.b16 %v122
    %v749 = vunpack.c.h.b16 %v122
    %v750 = vunpack.c.l.b16 %v123
    %v751 = vunpack.c.h.b16 %v123
    %v752 = vunpack.c.l.b16 %v124
    %v753 = vunpack.c.h.b16 %v124
    %v754 = vunpack.c.l.b16 %v125
    %v755 = vunpack.c.h.b16 %v125
    %v756 = vunpack.c.l.b16 %v126
    %v757 = vunpack.c.h.b16 %v126
    %v758 = vunpack.c.l.b16 %v127
    %v759 = vunpack.c.h.b16 %v127
    %v760 = vunpack.c.l.b16 %v128
    %v761 = vunpack.c.h.b16 %v128
    %v762 = vunpack.c.l.b16 %v129
    %v763 = vunpack.c.h.b16 %v129
    %v764 = vunpack.c.l.b16 %v130
    %v765 = vunpack.c.h.b16 %v130
    %v766 = vunpack.c.l.b16 %v131
    %v767 = vunpack.c.h.b16 %v131
    %v768 = vunpack.c.l.b16 %v132
    %v769 = vunpack.c.h.b16 %v132
    %v770 = vunpack.c.l.b16 %v133
    %v771 = vunpack.c.h.b16 %v133
    %v772 = vunpack.c.l.b16 %v134
    %v773 = vunpack.c.h.b16 %v134
    %v774 = vunpack.c.l.b16 %v135
    %v775 = vunpack.c.h.b16 %v135
    %v776 = vunpack.c.l.b16 %v136
    %v777 = vunpack.c.h.b16 %v136
    %v778 = vunpack.c.l.b16 %v137
    %v779 = vunpack.c.h.b16 %v137
    %v780 = vunpack.c.l.b16 %v138
    %v781 = vunpack.c.h.b16 %v138
    %v782 = vunpack.c.l.b16 %v139
    %v783 = vunpack.c.h.b16 %v139
    %v784 = vunpack.c.l.b16 %v140
    %v785 = vunpack.c.h.b16 %v140
    %v786 = vunpack.c.l.b16 %v141
    %v787 = vunpack.c.h.b16 %v141
    %v788 = vunpack.c.l.b16 %v142
    %v789 = vunpack.c.h.b16 %v142
    %v790 = vunpack.c.l.b16 %v143
    %v791 = vunpack.c.h.b16 %v143
    %v792 = vunpack.c.l.b16 %v144
    %v793 = vunpack.c.h.b16 %v144
    %v794 = vunpack.c.l.b16 %v145
    %v795 = vunpack.c.h.b16 %v145
    %v796 = vunpack.c.l.b16 %v146
    %v797 = vunpack.c.h.b16 %v146
    %v798 = vunpack.c.l.b16 %v147
    %v799 = vunpack.c.h.b16 %v147
    %v800 = vunpack.c.l.b16 %v148
    %v801 = vunpack.c.h.b16 %v148
    %v802 = vunpack.c.l.b16 %v149
    %v803 = vunpack.c.h.b16 %v149
    %v804 = vunpack.c.l.b16 %v150
    %v805 = vunpack.c.h.b16 %v150
    %v806 = vunpack.c.l.b16 %v151
    %v807 = vunpack.c.h.b16 %v151
    %v808 = vunpack.c.l.b16 %v152
    %v809 = vunpack.c.h.b16 %v152
    %v810 = vunpack.c.l.b16 %v153
    %v811 = vunpack.c.h.b16 %v153
    %v812 = vunpack.c.l.b16 %v154
    %v813 = vunpack.c.h.b16 %v154
    %v814 = vunpack.c.l.b16 %v155
    %v815 = vunpack.c.h.b16 %v155
    %v816 = vunpack.c.l.b16 %v156
    %v817 = vunpack.c.h.b16 %v156
    %v818 = vunpack.c.l.b16 %v157
    %v819 = vunpack.c.h.b16 %v157
    %v820 = vunpack.c.l.b16 %v158
    %v821 = vunpack.c.h.b16 %v158
    %v822 = vunpack.c.l.b16 %v159
    %v823 = vunpack.c.h.b16 %v159
    %v824 = vunpack.c.l.b16 %v160
    %v825 = vunpack.c.h.b16 %v160
    %v826 = vunpack.c.l.b16 %v161
    %v827 = vunpack.c.h.b16 %v161
    %v828 = vunpack.c.l.b16 %v162
    %v829 = vunpack.c.h.b16 %v162
    %v830 = vunpack.c.l.b16 %v163
    %v831 = vunpack.c.h.b16 %v163
    %v832 = vunpack.c.l.b16 %v164
    %v833 = vunpack.c.h.b16 %v164
    %v834 = vunpack.c.l.b16 %v165
    %v835 = vunpack.c.h.b16 %v165
    %v836 = vunpack.c.l.b16 %v166
    %v837 = vunpack.c.h.b16 %v166
    %v838 = vunpack.c.l.b16 %v167
    %v839 = vunpack.c.h.b16 %v167
    %v840 = vunpack.c.l.b16 %v168
    %v841 = vunpack.c.h.b16 %v168
    %v842 = vunpack.c.l.b16 %v169
    %v843 = vunpack.c.h.b16 %v169
    %v844 = vunpack.c.l.b16 %v170
    %v845 = vunpack.c.h.b16 %v170
    %v846 = vunpack.c.l.b16 %v171
    %v847 = vunpack.c.h.b16 %v171
    %v848 = vunpack.c.l.b16 %v172
    %v849 = vunpack.c.h.b16 %v172
    %v850 = vunpack.c.l.b16 %v173
    %v851 = vunpack.c.h.b16 %v173
    %v852 = vunpack.c.l.b16 %v174
    %v853 = vunpack.c.h.b16 %v174
    %v854 = vunpack.c.l.b16 %v175
    %v855 = vunpack.c.h.b16 %v175
    %v856 = vunpack.c.l.b16 %v176
    %v857 = vunpack.c.h.b16 %v176
    %v858 = vunpack.c.l.b16 %v177
    %v859 = vunpack.c.h.b16 %v177
    %v860 = vunpack.c.l.b16 %v178
    %v861 = vunpack.c.h.b16 %v178
    %v862 = vunpack.c.l.b16 %v179
    %v863 = vunpack.c.h.b16 %v179
    %v864 = vunpack.c.l.b16 %v180
    %v865 = vunpack.c.h.b16 %v180
    %v866 = vunpack.c.l.b16 %v181
    %v867 = vunpack.c.h.b16 %v181
    %v868 = vunpack.c.l.b16 %v182
    %v869 = vunpack.c.h.b16 %v182
    %v870 = vunpack.c.l.b16 %v183
    %v871 = vunpack.c.h.b16 %v183
    %v872 = vunpack.c.l.b16 %v184
    %v873 = vunpack.c.h.b16 %v184
    %v874 = vunpack.c.l.b16 %v185
    %v875 = vunpack.c.h.b16 %v185
    %v876 = vunpack.c.l.b16 %v186
    %v877 = vunpack.c.h.b16 %v186
    %v878 = vunpack.c.l.b16 %v187
    %v879 = vunpack.c.h.b16 %v187
    %v880 = vunpack.c.l.b16 %v188
    %v881 = vunpack.c.h.b16 %v188
    %v882 = vunpack.c.l.b16 %v189
    %v883 = vunpack.c.h.b16 %v189
    %v884 = vunpack.c.l.b16 %v190
    %v885 = vunpack.c.h.b16 %v190
    %v886 = vunpack.c.l.b16 %v191
    %v887 = vunpack.c.h.b16 %v191
    %v888 = vunpack.c.l.b16 %v192
    %v889 = vunpack.c.h.b16 %v192
    %v890 = vunpack.c.l.b16 %v193
    %v891 = vunpack.c.h.b16 %v193
    %v892 = vunpack.c.l.b16 %v194
    %v893 = vunpack.c.h.b16 %v194
    %v894 = vunpack.c.l.b16 %v195
    %v895 = vunpack.c.h.b16 %v195
    %v896 = vunpack.c.l.b16 %v196
    %v897 = vunpack.c.h.b16 %v196
    %v898 = vunpack.c.l.b16 %v197
    %v899 = vunpack.c.h.b16 %v197
    %v900 = vunpack.c.l.b16 %v198
    %v901 = vunpack.c.h.b16 %v198
    %v902 = vunpack.c.l.b16 %v199
    %v903 = vunpack.c.h.b16 %v199
    %v904 = vunpack.c.l.b16 %v200
    %v905 = vunpack.c.h.b16 %v200
    %v906 = vunpack.c.l.b16 %v201
    %v907 = vunpack.c.h.b16 %v201
    %v908 = vunpack.c.l.b16 %v202
    %v909 = vunpack.c.h.b16 %v202
    %v910 = vunpack.c.l.b16 %v203
    %v911 = vunpack.c.h.b16 %v203
    %v912 = vunpack.c.l.b16 %v204
    %v913 = vunpack.c.h.b16 %v204
    %v914 = vunpack.c.l.b16 %v205
    %v915 = vunpack.c.h.b16 %v205
    %v916 = vunpack.c.l.b16 %v206
    %v917 = vunpack.c.h.b16 %v206
    %v918 = vunpack.c.l.b16 %v207
    %v919 = vunpack.c.h.b16 %v207
    %v920 = vunpack.c.l.b16 %v208
    %v921 = vunpack.c.h.b16 %v208
    %v922 = vunpack.c.l.b16 %v209
    %v923 = vunpack.c.h.b16 %v209
    %v924 = vunpack.c.l.b16 %v210
    %v925 = vunpack.c.h.b16 %v210
    %v926 = vunpack.c.l.b16 %v211
    %v927 = vunpack.c.h.b16 %v211
    %v928 = vunpack.c.l.b16 %v212
    %v929 = vunpack.c.h.b16 %v212
    %v930 = vunpack.c.l.b16 %v213
    %v931 = vunpack.c.h.b16 %v213
    %v932 = vunpack.c.l.b16 %v214
    %v933 = vunpack.c.h.b16 %v214
    %v934 = vunpack.c.l.b16 %v215
    %v935 = vunpack.c.h.b16 %v215
    %v936 = vunpack.c.l.b16 %v216
    %v937 = vunpack.c.h.b16 %v216
    %v938 = vunpack.c.l.b16 %v217
    %v939 = vunpack.c.h.b16 %v217
    %v940 = vunpack.c.l.b16 %v218
    %v941 = vunpack.c.h.b16 %v218
    %v942 = vunpack.c.l.b16 %v219
    %v943 = vunpack.c.h.b16 %v219
    %v944 = vunpack.c.l.b16 %v220
    %v945 = vunpack.c.h.b16 %v220
    %v946 = vunpack.c.l.b16 %v221
    %v947 = vunpack.c.h.b16 %v221
    %v948 = vunpack.c.l.b16 %v222
    %v949 = vunpack.c.h.b16 %v222
    %v950 = vunpack.c.l.b16 %v223
    %v951 = vunpack.c.h.b16 %v223
    %v952 = vunpack.c.l.b16 %v224
    %v953 = vunpack.c.h.b16 %v224
    %v954 = vunpack.c.l.b16 %v225
    %v955 = vunpack.c.h.b16 %v225
    %v956 = vunpack.c.l.b16 %v226
    %v957 = vunpack.c.h.b16 %v226
    %v958 = vunpack.c.l.b16 %v227
    %v959 = vunpack.c.h.b16 %v227
    %v960 = vunpack.c.l.b16 %v228
    %v961 = vunpack.c.h.b16 %v228
    %v962 = vunpack.c.l.b16 %v229
    %v963 = vunpack.c.h.b16 %v229
    %v964 = vunpack.c.l.b16 %v230
    %v965 = vunpack.c.h.b16 %v230
    %v966 = vunpack.c.l.b16 %v231
    %v967 = vunpack.c.h.b16 %v231
    %v968 = vunpack.c.l.b16 %v232
    %v969 = vunpack.c.h.b16 %v232
    %v970 = vunpack.c.l.b16 %v233
    %v971 = vunpack.c.h.b16 %v233
    %v972 = vunpack.c.l.b16 %v234
    %v973 = vunpack.c.h.b16 %v234
    %v974 = vunpack.c.l.b16 %v235
    %v975 = vunpack.c.h.b16 %v235
    %v976 = vunpack.c.l.b16 %v236
    %v977 = vunpack.c.h.b16 %v236
    %v978 = vunpack.c.l.b16 %v237
    %v979 = vunpack.c.h.b16 %v237
    %v980 = vunpack.c.l.b16 %v238
    %v981 = vunpack.c.h.b16 %v238
    %v982 = vunpack.c.l.b16 %v239
    %v983 = vunpack.c.h.b16 %v239
    %v984 = vunpack.c.l.b16 %v240
    %v985 = vunpack.c.h.b16 %v240
    %v986 = vunpack.c.l.b16 %v241
    %v987 = vunpack.c.h.b16 %v241
    %v988 = vunpack.c.l.b16 %v242
    %v989 = vunpack.c.h.b16 %v242
    %v990 = vunpack.c.l.b16 %v243
    %v991 = vunpack.c.h.b16 %v243
    %v992 = vunpack.c.l.b16 %v244
    %v993 = vunpack.c.h.b16 %v244
    %v994 = vunpack.c.l.b16 %v245
    %v995 = vunpack.c.h.b16 %v245
    %v996 = vunpack.c.l.b16 %v246
    %v997 = vunpack.c.h.b16 %v246
    %v998 = vunpack.c.l.b16 %v247
    %v999 = vunpack.c.h.b16 %v247
    %v1000 = vunpack.c.l.b16 %v248
    %v1001 = vunpack.c.h.b16 %v248
    %v1002 = vunpack.c.l.b16 %v249
    %v1003 = vunpack.c.h.b16 %v249
    %v1004 = vunpack.c.l.b16 %v250
    %v1005 = vunpack.c.h.b16 %v250
    %v1006 = vunpack.c.l.b16 %v251
    %v1007 = vunpack.c.h.b16 %v251
    %v1008 = vunpack.c.l.b16 %v252
    %v1009 = vunpack.c.h.b16 %v252
    %v1010 = vunpack.c.l.b16 %v253
    %v1011 = vunpack.c.h.b16 %v253
    %v1012 = vunpack.c.l.b16 %v254
    %v1013 = vunpack.c.h.b16 %v254
    %v1014 = vunpack.c.l.b16 %v255
    %v1015 = vunpack.c.h.b16 %v255
    %v1016 = vunpack.c.l.b16 %v256
    %v1017 = vunpack.c.h.b16 %v256
    %v1018 = vunpack.c.l.b16 %v257
    %v1019 = vunpack.c.h.b16 %v257
    %v1020 = vunpack.c.l.b16 %v258
    %v1021 = vunpack.c.h.b16 %v258
    %v1022 = vunpack.c.l.b16 %v259
    %v1023 = vunpack.c.h.b16 %v259
    %v1024 = vunpack.c.l.b16 %v260
    %v1025 = vunpack.c.h.b16 %v260
    %v1026 = vunpack.c.l.b16 %v261
    %v1027 = vunpack.c.h.b16 %v261
    %v1028 = vunpack.c.l.b16 %v262
    %v1029 = vunpack.c.h.b16 %v262
    %v1030 = vunpack.c.l.b16 %v263
    %v1031 = vunpack.c.h.b16 %v263
    %v1032 = vunpack.c.l.b16 %v264
    %v1033 = vunpack.c.h.b16 %v264
    %v1034 = vunpack.c.l.b16 %v265
    %v1035 = vunpack.c.h.b16 %v265
    %v1036 = vunpack.c.l.b16 %v266
    %v1037 = vunpack.c.h.b16 %v266
    %v1038 = vunpack.c.l.b16 %v267
    %v1039 = vunpack.c.h.b16 %v267
    %v1040 = vunpack.c.l.b16 %v268
    %v1041 = vunpack.c.h.b16 %v268
    %v1042 = vunpack.c.l.b16 %v269
    %v1043 = vunpack.c.h.b16 %v269
    %v1044 = vunpack.c.l.b16 %v270
    %v1045 = vunpack.c.h.b16 %v270
    %v1046 = vunpack.c.l.b16 %v271
    %v1047 = vunpack.c.h.b16 %v271
    %v1048 = vunpack.c.l.b16 %v272
    %v1049 = vunpack.c.h.b16 %v272
    %v1050 = vunpack.c.l.b16 %v273
    %v1051 = vunpack.c.h.b16 %v273
    %v1052 = vunpack.c.l.b16 %v274
    %v1053 = vunpack.c.h.b16 %v274
    %v1054 = vunpack.c.l.b16 %v275
    %v1055 = vunpack.c.h.b16 %v275
    %v1056 = vunpack.c.l.b16 %v276
    %v1057 = vunpack.c.h.b16 %v276
    %v1058 = vunpack.c.l.b16 %v277
    %v1059 = vunpack.c.h.b16 %v277
    %v1060 = vunpack.c.l.b16 %v278
    %v1061 = vunpack.c.h.b16 %v278
    %v1062 = vunpack.c.l.b16 %v279
    %v1063 = vunpack.c.h.b16 %v279
    %v1064 = vunpack.c.l.b16 %v280
    %v1065 = vunpack.c.h.b16 %v280
    %v1066 = vunpack.c.l.b16 %v281
    %v1067 = vunpack.c.h.b16 %v281
    %v1068 = vunpack.c.l.b16 %v282
    %v1069 = vunpack.c.h.b16 %v282
    %v1070 = vunpack.c.l.b16 %v283
    %v1071 = vunpack.c.h.b16 %v283
    %v1072 = vunpack.c.l.b16 %v284
    %v1073 = vunpack.c.h.b16 %v284
    %v1074 = vunpack.c.l.b16 %v285
    %v1075 = vunpack.c.h.b16 %v285
    %v1076 = vunpack.c.l.b16 %v286
    %v1077 = vunpack.c.h.b16 %v286
    %v1078 = vunpack.c.l.b16 %v287
    %v1079 = vunpack.c.h.b16 %v287
    %v1080 = vunpack.c.l.b16 %v288
    %v1081 = vunpack.c.h.b16 %v288
    %v1082 = vunpack.c.l.b16 %v289
    %v1083 = vunpack.c.h.b16 %v289
    %v1084 = vunpack.c.l.b16 %v290
    %v1085 = vunpack.c.h.b16 %v290
    %v1086 = vunpack.c.l.b16 %v291
    %v1087 = vunpack.c.h.b16 %v291
    %v1088 = vunpack.c.l.b16 %v292
    %v1089 = vunpack.c.h.b16 %v292
    %v1090 = vunpack.c.l.b16 %v293
    %v1091 = vunpack.c.h.b16 %v293
    %v1092 = vunpack.c.l.b16 %v294
    %v1093 = vunpack.c.h.b16 %v294
    %v1094 = vunpack.c.l.b16 %v295
    %v1095 = vunpack.c.h.b16 %v295
    %v1096 = vunpack.c.l.b16 %v296
    %v1097 = vunpack.c.h.b16 %v296
    %v1098 = vunpack.c.l.b16 %v297
    %v1099 = vunpack.c.h.b16 %v297
    %v1100 = vunpack.c.l.b16 %v298
    %v1101 = vunpack.c.h.b16 %v298
    %v1102 = vunpack.c.l.b16 %v299
    %v1103 = vunpack.c.h.b16 %v299
    %v1104 = vunpack.c.l.b16 %v300
    %v1105 = vunpack.c.h.b16 %v300
    %v1106 = vunpack.c.l.b16 %v301
    %v1107 = vunpack.c.h.b16 %v301
    %v1108 = vunpack.c.l.b16 %v302
    %v1109 = vunpack.c.h.b16 %v302
    %v1110 = vunpack.c.l.b16 %v303
    %v1111 = vunpack.c.h.b16 %v303
    %v1112 = vunpack.c.l.b16 %v304
    %v1113 = vunpack.c.h.b16 %v304
    %v1114 = vunpack.c.l.b16 %v305
    %v1115 = vunpack.c.h.b16 %v305
    %v1116 = vunpack.c.l.b16 %v306
    %v1117 = vunpack.c.h.b16 %v306
    %v1118 = vunpack.c.l.b16 %v307
    %v1119 = vunpack.c.h.b16 %v307
    %v1120 = vunpack.c.l.b16 %v308
    %v1121 = vunpack.c.h.b16 %v308
    %v1122 = vunpack.c.l.b16 %v309
    %v1123 = vunpack.c.h.b16 %v309
    %v1124 = vunpack.c.l.b16 %v310
    %v1125 = vunpack.c.h.b16 %v310
    %v1126 = vunpack.c.l.b16 %v311
    %v1127 = vunpack.c.h.b16 %v311
    %v1128 = vunpack.c.l.b16 %v312
    %v1129 = vunpack.c.h.b16 %v312
    %v1130 = vunpack.c.l.b16 %v313
    %v1131 = vunpack.c.h.b16 %v313
    %v1132 = vunpack.c.l.b16 %v314
    %v1133 = vunpack.c.h.b16 %v314
    %v1134 = vunpack.c.l.b16 %v315
    %v1135 = vunpack.c.h.b16 %v315
    %v1136 = vunpack.c.l.b16 %v316
    %v1137 = vunpack.c.h.b16 %v316
    %v1138 = vunpack.c.l.b16 %v317
    %v1139 = vunpack.c.h.b16 %v317
    %v1140 = vunpack.c.l.b16 %v318
    %v1141 = vunpack.c.h.b16 %v318
    %v1142 = vunpack.c.l.b16 %v319
    %v1143 = vunpack.c.h.b16 %v319
    %v1144 = vunpack.c.l.b16 %v320
    %v1145 = vunpack.c.h.b16 %v320
    %v1146 = vunpack.c.l.b16 %v321
    %v1147 = vunpack.c.h.b16 %v321
    %v1148 = vunpack.c.l.b16 %v322
    %v1149 = vunpack.c.h.b16 %v322
    %v1150 = vunpack.c.l.b16 %v323
    %v1151 = vunpack.c.h.b16 %v323
    %v1152 = vunpack.c.l.b16 %v324
    %v1153 = vunpack.c.h.b16 %v324
    %v1154 = vunpack.c.l.b16 %v325
    %v1155 = vunpack.c.h.b16 %v325
    %v1156 = vunpack.c.l.b16 %v326
    %v1157 = vunpack.c.h.b16 %v326
    %v1158 = vunpack.c.l.b16 %v327
    %v1159 = vunpack.c.h.b16 %v327
    %v1160 = vunpack.c.l.b16 %v328
    %v1161 = vunpack.c.h.b16 %v328
    %v1162 = vunpack.c.l.b16 %v329
    %v1163 = vunpack.c.h.b16 %v329
    %v1164 = vunpack.c.l.b16 %v330
    %v1165 = vunpack.c.h.b16 %v330
    %v1166 = vunpack.c.l.b16 %v331
    %v1167 = vunpack.c.h.b16 %v331
    %v1168 = vunpack.c.l.b16 %v332
    %v1169 = vunpack.c.h.b16 %v332
    %v1170 = vunpack.c.l.b16 %v333
    %v1171 = vunpack.c.h.b16 %v333
    %v1172 = vunpack.c.l.b16 %v334
    %v1173 = vunpack.c.h.b16 %v334
    %v1174 = vunpack.c.l.b16 %v335
    %v1175 = vunpack.c.h.b16 %v335
    %v1176 = vunpack.c.l.b16 %v336
    %v1177 = vunpack.c.h.b16 %v336
    %v1178 = vunpack.c.l.b16 %v337
    %v1179 = vunpack.c.h.b16 %v337
    %v1180 = vunpack.c.l.b16 %v338
    %v1181 = vunpack.c.h.b16 %v338
    %v1182 = vunpack.c.l.b16 %v339
    %v1183 = vunpack.c.h.b16 %v339
    %v1184 = vunpack.c.l.b16 %v340
    %v1185 = vunpack.c.h.b16 %v340
    %v1186 = vpack.c.b16 %v662, %v658
    %v1187 = vpack.c.b16 %v663, %v659
    %v1188 = vpack.c.b16 %v664, %v660
    %v1189 = vpack.c.b16 %v665, %v661
    %v1190 = vpack.c.b16 %v670, %v666
    %v1191 = vpack.c.b16 %v671, %v667
    %v1192 = vpack.c.b16 %v672, %v668
    %v1193 = vpack.c.b16 %v673, %v669
    %v1194 = vpack.c.b16 %v678, %v674
    %v1195 = vpack.c.b16 %v679, %v675
    %v1196 = vpack.c.b16 %v680, %v676
    %v1197 = vpack.c.b16 %v681, %v677
    %v1198 = vpack.c.b16 %v686, %v682
    %v1199 = vpack.c.b16 %v687, %v683
    %v1200 = vpack.c.b16 %v688, %v684
    %v1201 = vpack.c.b16 %v689, %v685
    %v1202 = vpack.c.b16 %v694, %v690
    %v1203 = vpack.c.b16 %v695, %v691
    %v1204 = vpack.c.b16 %v696, %v692
    %v1205 = vpack.c.b16 %v697, %v693
    %v1206 = vpack.c.b16 %v702, %v698
    %v1207 = vpack.c.b16 %v703, %v699
    %v1208 = vpack.c.b16 %v704, %v700
    %v1209 = vpack.c.b16 %v705, %v701
    %v1210 = vpack.c.b16 %v710, %v706
    %v1211 = vpack.c.b16 %v711, %v707
    %v1212 = vpack.c.b16 %v712, %v708
    %v1213 = vpack.c.b16 %v713, %v709
    %v1214 = vpack.c.b16 %v718, %v714
    %v1215 = vpack.c.b16 %v719, %v715
    %v1216 = vpack.c.b16 %v720, %v716
    %v1217 = vpack.c.b16 %v721, %v717
    %v1218 = vpack.c.b16 %v726, %v722
    %v1219 = vpack.c.b16 %v727, %v723
    %v1220 = vpack.c.b16 %v728, %v724
    %v1221 = vpack.c.b16 %v729, %v725
    %v1222 = vpack.c.b16 %v734, %v730
    %v1223 = vpack.c.b16 %v735, %v731
    %v1224 = vpack.c.b16 %v736, %v732
    %v1225 = vpack.c.b16 %v737, %v733
    %v1226 = vpack.c.b16 %v742, %v738
    %v1227 = vpack.c.b16 %v743, %v739
    %v1228 = vpack.c.b16 %v744, %v740
    %v1229 = vpack.c.b16 %v745, %v741
    %v1230 = vpack.c.b16 %v750, %v746
    %v1231 = vpack.c.b16 %v751, %v747
    %v1232 = vpack.c.b16 %v752, %v748
    %v1233 = vpack.c.b16 %v753, %v749
    %v1234 = vpack.c.b16 %v758, %v754
    %v1235 = vpack.c.b16 %v759, %v755
    %v1236 = vpack.c.b16 %v760, %v756
    %v1237 = vpack.c.b16 %v761, %v757
    %v1238 = vpack.c.b16 %v766, %v762
    %v1239 = vpack.c.b16 %v767, %v763
    %v1240 = vpack.c.b16 %v768, %v764
    %v1241 = vpack.c.b16 %v769, %v765
    %v1242 = vpack.c.b16 %v774, %v770
    %v1243 = vpack.c.b16 %v775, %v771
    %v1244 = vpack.c.b16 %v776, %v772
    %v1245 = vpack.c.b16 %v777, %v773
    %v1246 = vpack.c.b16 %v782, %v778
    %v1247 = vpack.c.b16 %v783, %v779
    %v1248 = vpack.c.b16 %v784, %v780
    %v1249 = vpack.c.b16 %v785, %v781
    %v1250 = vpack.c.b16 %v790, %v786
    %v1251 = vpack.c.b16 %v791, %v787
    %v1252 = vpack.c.b16 %v792, %v788
    %v1253 = vpack.c.b16 %v793, %v789
    %v1254 = vpack.c.b16 %v798, %v794
    %v1255 = vpack.c.b16 %v799, %v795
    %v1256 = vpack.c.b16 %v800, %v796
    %v1257 = vpack.c.b16 %v801, %v797
    %v1258 = vpack.c.b16 %v806, %v802
    %v1259 = vpack.c.b16 %v807, %v803
    %v1260 = vpack.c.b16 %v808, %v804
    %v1261 = vpack.c.b16 %v809, %v805
    %v1262 = vpack.c.b16 %v814, %v810
    %v1263 = vpack.c.b16 %v815, %v811
    %v1264 = vpack.c.b16 %v816, %v812
    %v1265 = vpack.c.b16 %v817, %v813
    %v1266 = vpack.c.b16 %v822, %v818
    %v1267 = vpack.c.b16 %v823, %v819
    %v1268 = vpack.c.b16 %v824, %v820
    %v1269 = vpack.c.b16 %v825, %v821
    %v1270 = vpack.c.b16 %v830, %v826
    %v1271 = vpack.c.b16 %v831, %v827
    %v1272 = vpack.c.b16 %v832, %v828
    %v1273 = vpack.c.b16 %v833, %v829
    %v1274 = vpack.c.b16 %v838, %v834
    %v1275 = vpack.c.b16 %v839, %v835
    %v1276 = vpack.c.b16 %v840, %v836
    %v1277 = vpack.c.b16 %v841, %v837
    %v1278 = vpack.c.b16 %v846, %v842
    %v1279 = vpack.c.b16 %v847, %v843
    %v1280 = vpack.c.b16 %v848, %v844
    %v1281 = vpack.c.b16 %v849, %v845
    %v1282 = vpack.c.b16 %v854, %v850
    %v1283 = vpack.c.b16 %v855, %v851
    %v1284 = vpack.c.b16 %v856, %v852
    %v1285 = vpack.c.b16 %v857, %v853
    %v1286 = vpack.c.b16 %v862, %v858
    %v1287 = vpack.c.b16 %v863, %v859
    %v1288 = vpack.c.b16 %v864, %v860
    %v1289 = vpack.c.b16 %v865, %v861
    %v1290 = vpack.c.b16 %v870, %v866
    %v1291 = vpack.c.b16 %v871, %v867
    %v1292 = vpack.c.b16 %v872, %v868
    %v1293 = vpack.c.b16 %v873, %v869
    %v1294 = vpack.c.b16 %v878, %v874
    %v1295 = vpack.c.b16 %v879, %v875
    %v1296 = vpack.c.b16 %v880, %v876
    %v1297 = vpack.c.b16 %v881, %v877
    %v1298 = vpack.c.b16 %v886, %v882
    %v1299 = vpack.c.b16 %v887, %v883
    %v1300 = vpack.c.b16 %v888, %v884
    %v1301 = vpack.c.b16 %v889, %v885
    %v1302 = vpack.c.b16 %v894, %v890
    %v1303 = vpack.c.b16 %v895, %v891
    %v1304 = vpack.c.b16 %v896, %v892
    %v1305 = vpack.c.b16 %v897, %v893
    %v1306 = vpack.c.b16 %v902, %v898
    %v1307 = vpack.c.b16 %v903, %v899
    %v1308 = vpack.c.b16 %v904, %v900
    %v1309 = vpack.c.b16 %v905, %v901
    %v1310 = vpack.c.b16 %v910, %v906
    %v1311 = vpack.c.b16 %v911, %v907
    %v1312 = vpack.c.b16 %v912, %v908
    %v1313 = vpack.c.b16 %v913, %v909
    %v1314 = vpack.c.b16 %v918, %v914
    %v1315 = vpack.c.b16 %v919, %v915
    %v1316 = vpack.c.b16 %v920, %v916
    %v1317 = vpack.c.b16 %v921, %v917
    %v1318 = vpack.c.b16 %v926, %v922
    %v1319 = vpack.c.b16 %v927, %v923
    %v1320 = vpack.c.b16 %v928, %v924
    %v1321 = vpack.c.b16 %v929, %v925
    %v1322 = vpack.c.b16 %v934, %v930
    %v1323 = vpack.c.b16 %v935, %v931
    %v1324 = vpack.c.b16 %v936, %v932
    %v1325 = vpack.c.b16 %v937, %v933
    %v1326 = vpack.c.b16 %v942, %v938
    %v1327 = vpack.c.b16 %v943, %v939
    %v1328 = vpack.c.b16 %v944, %v940
    %v1329 = vpack.c.b16 %v945, %v941
    %v1330 = vpack.c.b16 %v950, %v946
    %v1331 = vpack.c.b16 %v951, %v947
    %v1332 = vpack.c.b16 %v952, %v948
    %v1333 = vpack.c.b16 %v953, %v949
    %v1334 = vpack.c.b16 %v958, %v954
    %v1335 = vpack.c.b16 %v959, %v955
    %v1336 = vpack.c.b16 %v960, %v956
    %v1337 = vpack.c.b16 %v961, %v957
    %v1338 = vpack.c.b16 %v966, %v962
    %v1339 = vpack.c.b16 %v967, %v963
    %v1340 = vpack.c.b16 %v968, %v964
    %v1341 = vpack.c.b16 %v969, %v965
    %v1342 = vpack.c.b16 %v974, %v970
    %v1343 = vpack.c.b16 %v975, %v971
    %v1344 = vpack.c.b16 %v976, %v972
    %v1345 = vpack.c.b16 %v977, %v973
    %v1346 = vpack.c.b16 %v982, %v978
    %v1347 = vpack.c.b16 %v983, %v979
    %v1348 = vpack.c.b16 %v984, %v980
    %v1349 = vpack.c.b16 %v985, %v981
    %v1350 = vpack.c.b16 %v990, %v986
    %v1351 = vpack.c.b16 %v991, %v987
    %v1352 = vpack.c.b16 %v992, %v988
    %v1353 = vpack.c.b16 %v993, %v989
    %v1354 = vpack.c.b16 %v998, %v994
    %v1355 = vpack.c.b16 %v999, %v995
    %v1356 = vpack.c.b16 %v1000, %v996
    %v1357 = vpack.c.b16 %v1001, %v997
    %v1358 = vpack.c.b16 %v1006, %v1002
    %v1359 = vpack.c.b16 %v1007, %v1003
    %v1360 = vpack.c.b16 %v1008, %v1004
    %v1361 = vpack.c.b16 %v1009, %v1005
    %v1362 = vpack.c.b16 %v1014, %v1010
    %v1363 = vpack.c.b16 %v1015, %v1011
    %v1364 = vpack.c.b16 %v1016, %v1012
    %v1365 = vpack.c.b16 %v1017, %v1013
    %v1366 = vpack.c.b16 %v1022, %v1018
    %v1367 = vpack.c.b16 %v1023, %v1019
    %v1368 = vpack.c.b16 %v1024, %v1020
    %v1369 = vpack.c.b16 %v1025, %v1021
    %v1370 = vpack.c.b16 %v1030, %v1026
    %v1371 = vpack.c.b16 %v1031, %v1027
    %v1372 = vpack.c.b16 %v1032, %v1028
    %v1373 = vpack.c.b16 %v1033, %v1029
    %v1374 = vpack.c.b16 %v1038, %v1034
    %v1375 = vpack.c.b16 %v1039, %v1035
    %v1376 = vpack.c.b16 %v1040, %v1036
    %v1377 = vpack.c.b16 %v1041, %v1037
    %v1378 = vpack.c.b16 %v1046, %v1042
    %v1379 = vpack.c.b16 %v1047, %v1043
    %v1380 = vpack.c.b16 %v1048, %v1044
    %v1381 = vpack.c.b16 %v1049, %v1045
    %v1382 = vpack.c.b16 %v1054, %v1050
    %v1383 = vpack.c.b16 %v1055, %v1051
    %v1384 = vpack.c.b16 %v1056, %v1052
    %v1385 = vpack.c.b16 %v1057, %v1053
    %v1386 = vpack.c.b16 %v1062, %v1058
    %v1387 = vpack.c.b16 %v1063, %v1059
    %v1388 = vpack.c.b16 %v1064, %v1060
    %v1389 = vpack.c.b16 %v1065, %v1061
    %v1390 = vpack.c.b16 %v1070, %v1066
    %v1391 = vpack.c.b16 %v1071, %v1067
    %v1392 = vpack.c.b16 %v1072, %v1068
    %v1393 = vpack.c.b16 %v1073, %v1069
    %v1394 = vpack.c.b16 %v1078, %v1074
    %v1395 = vpack.c.b16 %v1079, %v1075
    %v1396 = vpack.c.b16 %v1080, %v1076
    %v1397 = vpack.c.b16 %v1081, %v1077
    %v1398 = vpack.c.b16 %v1086, %v1082
    %v1399 = vpack.c.b16 %v1087, %v1083
    %v1400 = vpack.c.b16 %v1088, %v1084
    %v1401 = vpack.c.b16 %v1089, %v1085
    %v1402 = vpack.c.b16 %v1094, %v1090
    %v1403 = vpack.c.b16 %v1095, %v1091
    %v1404 = vpack.c.b16 %v1096, %v1092
    %v1405 = vpack.c.b16 %v1097, %v1093
    %v1406 = vpack.c.b16 %v1102, %v1098
    %v1407 = vpack.c.b16 %v1103, %v1099
    %v1408 = vpack.c.b16 %v1104, %v1100
    %v1409 = vpack.c.b16 %v1105, %v1101
    %v1410 = vpack.c.b16 %v1110, %v1106
    %v1411 = vpack.c.b16 %v1111, %v1107
    %v1412 = vpack.c.b16 %v1112, %v1108
    %v1413 = vpack.c.b16 %v1113, %v1109
    %v1414 = vpack.c.b16 %v1118, %v1114
    %v1415 = vpack.c.b16 %v1119, %v1115
    %v1416 = vpack.c.b16 %v1120, %v1116
    %v1417 = vpack.c.b16 %v1121, %v1117
    %v1418 = vpack.c.b16 %v1126, %v1122
    %v1419 = vpack.c.b16 %v1127, %v1123
    %v1420 = vpack.c.b16 %v1128, %v1124
    %v1421 = vpack.c.b16 %v1129, %v1125
    %v1422 = vpack.c.b16 %v1134, %v1130
    %v1423 = vpack.c.b16 %v1135, %v1131
    %v1424 = vpack.c.b16 %v1136, %v1132
    %v1425 = vpack.c.b16 %v1137, %v1133
    %v1426 = vpack.c.b16 %v1142, %v1138
    %v1427 = vpack.c.b16 %v1143, %v1139
    %v1428 = vpack.c.b16 %v1144, %v1140
    %v1429 = vpack.c.b16 %v1145, %v1141
    %v1430 = vpack.c.b16 %v1150, %v1146
    %v1431 = vpack.c.b16 %v1151, %v1147
    %v1432 = vpack.c.b16 %v1152, %v1148
    %v1433 = vpack.c.b16 %v1153, %v1149
    %v1434 = vpack.c.b16 %v1158, %v1154
    %v1435 = vpack.c.b16 %v1159, %v1155
    %v1436 = vpack.c.b16 %v1160, %v1156
    %v1437 = vpack.c.b16 %v1161, %v1157
    %v1438 = vpack.c.b16 %v1166, %v1162
    %v1439 = vpack.c.b16 %v1167, %v1163
    %v1440 = vpack.c.b16 %v1168, %v1164
    %v1441 = vpack.c.b16 %v1169, %v1165
    %v1442 = vpack.c.b16 %v1174, %v1170
    %v1443 = vpack.c.b16 %v1175, %v1171
    %v1444 = vpack.c.b16 %v1176, %v1172
    %v1445 = vpack.c.b16 %v1177, %v1173
    %v1446 = vpack.c.b16 %v1182, %v1178
    %v1447 = vpack.c.b16 %v1183, %v1179
    %v1448 = vpack.c.b16 %v1184, %v1180
    %v1449 = vpack.c.b16 %v1185, %v1181
    %vm1714 = vcmask 261120
    %v1716 = vsel %vm1714, %v385, 0
    %1718 = vmatprep.subr.bf16.mxu0 %v1215
    %1719 = vmatpush1.bf16.msra.mxu0 %v1214
    %1720 = vmatprep.subr.bf16.mxu0 %v1211
    %1721 = vmatpush1.bf16.msra.mxu0 %v1210
    %1722 = vmatprep.subr.bf16.mxu0 %v1207
    %1723 = vmatpush1.bf16.msra.mxu0 %v1206
    %1724 = vmatprep.subr.bf16.mxu0 %v1203
    %1725 = vmatpush1.bf16.msra.mxu0 %v1202
    %1726 = vmatprep.subr.bf16.mxu0 %v1199
    %1727 = vmatpush1.bf16.msra.mxu0 %v1198
    %1728 = vmatprep.subr.bf16.mxu0 %v1195
    %1729 = vmatpush1.bf16.msra.mxu0 %v1194
    %1730 = vmatprep.subr.bf16.mxu0 %v1191
    %1731 = vmatpush1.bf16.msra.mxu0 %v1190
    %1732 = vmatprep.subr.bf16.mxu0 %v1187
    %1733 = vmatpush1.bf16.msra.mxu0 %v1186
    %1734 = vmatprep.subr.bf16.mxu0 %v1247
    %1735 = vmatpush2.bf16.msra.mxu0 %v1246
    %1736 = vmatprep.subr.bf16.mxu0 %v1243
    %1737 = vmatpush2.bf16.msra.mxu0 %v1242
    %1738 = vmatprep.subr.bf16.mxu0 %v1239
    %1739 = vmatpush2.bf16.msra.mxu0 %v1238
    %1740 = vmatprep.subr.bf16.mxu0 %v1235
    %1741 = vmatpush2.bf16.msra.mxu0 %v1234
    %1742 = vmatprep.subr.bf16.mxu0 %v1231
    %1743 = vmatpush2.bf16.msra.mxu0 %v1230
    %1744 = vmatprep.subr.bf16.mxu0 %v1227
    %1745 = vmatpush2.bf16.msra.mxu0 %v1226
    %1746 = vmatprep.subr.bf16.mxu0 %v1223
    %1747 = vmatpush2.bf16.msra.mxu0 %v1222
    %1748 = vmatprep.subr.bf16.mxu0 %v1219
    %1749 = vmatpush2.bf16.msra.mxu0 %v1218
    %1750 = vmatprep.mubr.bf16.mxu0 %v378
    %1751 = vmatmul.mubr.bf16.gmra.mxu0 %v377
    %v1752 = vpop.f32.mrf.mxu0
    %v1753 = vadd.f32 %v346, %v1752
    %v1754 = vpop.f32.mrf.mxu0
    %v1755 = vadd.f32 %v350, %v1754
    %v1756 = vpop.f32.mrf.mxu0
    %v1757 = vpop.f32.mrf.mxu0
    %1758 = vdwg.mxu0
    %1759 = vmatprep.subr.bf16.mxu0 %v1279
    %1760 = vmatpush1.bf16.msra.mxu0 %v1278
    %1761 = vmatprep.subr.bf16.mxu0 %v1275
    %1762 = vmatpush1.bf16.msra.mxu0 %v1274
    %1763 = vmatprep.subr.bf16.mxu0 %v1271
    %1764 = vmatpush1.bf16.msra.mxu0 %v1270
    %1765 = vmatprep.subr.bf16.mxu0 %v1267
    %1766 = vmatpush1.bf16.msra.mxu0 %v1266
    %1767 = vmatprep.subr.bf16.mxu0 %v1263
    %1768 = vmatpush1.bf16.msra.mxu0 %v1262
    %1769 = vmatprep.subr.bf16.mxu0 %v1259
    %1770 = vmatpush1.bf16.msra.mxu0 %v1258
    %1771 = vmatprep.subr.bf16.mxu0 %v1255
    %1772 = vmatpush1.bf16.msra.mxu0 %v1254
    %1773 = vmatprep.subr.bf16.mxu0 %v1251
    %1774 = vmatpush1.bf16.msra.mxu0 %v1250
    %1775 = vmatprep.subr.bf16.mxu0 %v1311
    %1776 = vmatpush2.bf16.msra.mxu0 %v1310
    %1777 = vmatprep.subr.bf16.mxu0 %v1307
    %1778 = vmatpush2.bf16.msra.mxu0 %v1306
    %1779 = vmatprep.subr.bf16.mxu0 %v1303
    %1780 = vmatpush2.bf16.msra.mxu0 %v1302
    %1781 = vmatprep.subr.bf16.mxu0 %v1299
    %1782 = vmatpush2.bf16.msra.mxu0 %v1298
    %1783 = vmatprep.subr.bf16.mxu0 %v1295
    %1784 = vmatpush2.bf16.msra.mxu0 %v1294
    %1785 = vmatprep.subr.bf16.mxu0 %v1291
    %1786 = vmatpush2.bf16.msra.mxu0 %v1290
    %1787 = vmatprep.subr.bf16.mxu0 %v1287
    %1788 = vmatpush2.bf16.msra.mxu0 %v1286
    %1789 = vmatprep.subr.bf16.mxu0 %v1283
    %1790 = vmatpush2.bf16.msra.mxu0 %v1282
    %1791 = vmatprep.mubr.bf16.mxu0 %v380
    %1792 = vmatmul.mubr.bf16.gmra.mxu0 %v379
    %v1793 = vpop.f32.mrf.mxu0
    %v1794 = vadd.f32 %v1753, %v1793
    %v1795 = vpop.f32.mrf.mxu0
    %v1796 = vadd.f32 %v1755, %v1795
    %v1797 = vpop.f32.mrf.mxu0
    %v1798 = vpop.f32.mrf.mxu0
    %1799 = vdwg.mxu0
    %1800 = vmatprep.subr.bf16.mxu0 %v1343
    %1801 = vmatpush1.bf16.msra.mxu0 %v1342
    %1802 = vmatprep.subr.bf16.mxu0 %v1339
    %1803 = vmatpush1.bf16.msra.mxu0 %v1338
    %1804 = vmatprep.subr.bf16.mxu0 %v1335
    %1805 = vmatpush1.bf16.msra.mxu0 %v1334
    %1806 = vmatprep.subr.bf16.mxu0 %v1331
    %1807 = vmatpush1.bf16.msra.mxu0 %v1330
    %1808 = vmatprep.subr.bf16.mxu0 %v1327
    %1809 = vmatpush1.bf16.msra.mxu0 %v1326
    %1810 = vmatprep.subr.bf16.mxu0 %v1323
    %1811 = vmatpush1.bf16.msra.mxu0 %v1322
    %1812 = vmatprep.subr.bf16.mxu0 %v1319
    %1813 = vmatpush1.bf16.msra.mxu0 %v1318
    %1814 = vmatprep.subr.bf16.mxu0 %v1315
    %1815 = vmatpush1.bf16.msra.mxu0 %v1314
    %1816 = vmatprep.subr.bf16.mxu0 %v1375
    %1817 = vmatpush2.bf16.msra.mxu0 %v1374
    %1818 = vmatprep.subr.bf16.mxu0 %v1371
    %1819 = vmatpush2.bf16.msra.mxu0 %v1370
    %1820 = vmatprep.subr.bf16.mxu0 %v1367
    %1821 = vmatpush2.bf16.msra.mxu0 %v1366
    %1822 = vmatprep.subr.bf16.mxu0 %v1363
    %1823 = vmatpush2.bf16.msra.mxu0 %v1362
    %1824 = vmatprep.subr.bf16.mxu0 %v1359
    %1825 = vmatpush2.bf16.msra.mxu0 %v1358
    %1826 = vmatprep.subr.bf16.mxu0 %v1355
    %1827 = vmatpush2.bf16.msra.mxu0 %v1354
    %1828 = vmatprep.subr.bf16.mxu0 %v1351
    %1829 = vmatpush2.bf16.msra.mxu0 %v1350
    %1830 = vmatprep.subr.bf16.mxu0 %v1347
    %1831 = vmatpush2.bf16.msra.mxu0 %v1346
    %1832 = vmatprep.mubr.bf16.mxu0 %v382
    %1833 = vmatmul.mubr.bf16.gmra.mxu0 %v381
    %v1834 = vpop.f32.mrf.mxu0
    %v1835 = vadd.f32 %v1794, %v1834
    %v1836 = vpop.f32.mrf.mxu0
    %v1837 = vadd.f32 %v1796, %v1836
    %v1838 = vpop.f32.mrf.mxu0
    %v1839 = vpop.f32.mrf.mxu0
    %1840 = vdwg.mxu0
    %1841 = vmatprep.subr.bf16.mxu0 %v1407
    %1842 = vmatpush1.bf16.msra.mxu0 %v1406
    %1843 = vmatprep.subr.bf16.mxu0 %v1403
    %1844 = vmatpush1.bf16.msra.mxu0 %v1402
    %1845 = vmatprep.subr.bf16.mxu0 %v1399
    %1846 = vmatpush1.bf16.msra.mxu0 %v1398
    %1847 = vmatprep.subr.bf16.mxu0 %v1395
    %1848 = vmatpush1.bf16.msra.mxu0 %v1394
    %1849 = vmatprep.subr.bf16.mxu0 %v1391
    %1850 = vmatpush1.bf16.msra.mxu0 %v1390
    %1851 = vmatprep.subr.bf16.mxu0 %v1387
    %1852 = vmatpush1.bf16.msra.mxu0 %v1386
    %1853 = vmatprep.subr.bf16.mxu0 %v1383
    %1854 = vmatpush1.bf16.msra.mxu0 %v1382
    %1855 = vmatprep.subr.bf16.mxu0 %v1379
    %1856 = vmatpush1.bf16.msra.mxu0 %v1378
    %1857 = vmatprep.subr.bf16.mxu0 %v1439
    %1858 = vmatpush2.bf16.msra.mxu0 %v1438
    %1859 = vmatprep.subr.bf16.mxu0 %v1435
    %1860 = vmatpush2.bf16.msra.mxu0 %v1434
    %1861 = vmatprep.subr.bf16.mxu0 %v1431
    %1862 = vmatpush2.bf16.msra.mxu0 %v1430
    %1863 = vmatprep.subr.bf16.mxu0 %v1427
    %1864 = vmatpush2.bf16.msra.mxu0 %v1426
    %1865 = vmatprep.subr.bf16.mxu0 %v1423
    %1866 = vmatpush2.bf16.msra.mxu0 %v1422
    %1867 = vmatprep.subr.bf16.mxu0 %v1419
    %1868 = vmatpush2.bf16.msra.mxu0 %v1418
    %1869 = vmatprep.subr.bf16.mxu0 %v1415
    %1870 = vmatpush2.bf16.msra.mxu0 %v1414
    %1871 = vmatprep.subr.bf16.mxu0 %v1411
    %1872 = vmatpush2.bf16.msra.mxu0 %v1410
    %1873 = vmatprep.mubr.bf16.mxu0 %v384
    %1874 = vmatmul.mubr.bf16.gmra.mxu0 %v383
    %v1875 = vpop.f32.mrf.mxu0
    %v1876 = vadd.f32 %v1835, %v1875
    %v1877 = vpop.f32.mrf.mxu0
    %v1878 = vadd.f32 %v1837, %v1877
    %v1879 = vpop.f32.mrf.mxu0
    %v1880 = vpop.f32.mrf.mxu0
    %1881 = vdwg.mxu0
    %1882 = vmatprep.subr.bf16.mxu0 0
    %1883 = vmatpush1.bf16.msra.mxu0 0
    %1884 = vmatprep.subr.bf16.mxu0 0
    %1885 = vmatpush1.bf16.msra.mxu0 0
    %1886 = vmatprep.subr.bf16.mxu0 0
    %1887 = vmatpush1.bf16.msra.mxu0 0
    %1888 = vmatprep.subr.bf16.mxu0 0
    %1889 = vmatpush1.bf16.msra.mxu0 0
    %1890 = vmatprep.subr.bf16.mxu0 0
    %1891 = vmatpush1.bf16.msra.mxu0 0
    %1892 = vmatprep.subr.bf16.mxu0 0
    %1893 = vmatpush1.bf16.msra.mxu0 0
    %1894 = vmatprep.subr.bf16.mxu0 %v1447
    %1895 = vmatpush1.bf16.msra.mxu0 %v1446
    %1896 = vmatprep.subr.bf16.mxu0 %v1443
    %1897 = vmatpush1.bf16.msra.mxu0 %v1442
    %1898 = vmatprep.subr.bf16.mxu0 0
    %1899 = vmatpush2.bf16.msra.mxu0 0
    %1900 = vmatprep.subr.bf16.mxu0 0
    %1901 = vmatpush2.bf16.msra.mxu0 0
    %1902 = vmatprep.subr.bf16.mxu0 0
    %1903 = vmatpush2.bf16.msra.mxu0 0
    %1904 = vmatprep.subr.bf16.mxu0 0
    %1905 = vmatpush2.bf16.msra.mxu0 0
    %1906 = vmatprep.subr.bf16.mxu0 0
    %1907 = vmatpush2.bf16.msra.mxu0 0
    %1908 = vmatprep.subr.bf16.mxu0 0
    %1909 = vmatpush2.bf16.msra.mxu0 0
    %1910 = vmatprep.subr.bf16.mxu0 0
    %1911 = vmatpush2.bf16.msra.mxu0 0
    %1912 = vmatprep.subr.bf16.mxu0 0
    %1913 = vmatpush2.bf16.msra.mxu0 0
    %1914 = vmatprep.mubr.bf16.mxu0 0
    %1915 = vmatmul.mubr.bf16.gmra.mxu0 %v1716
    %v1916 = vpop.f32.mrf.mxu0
    %v1917 = vadd.f32 %v1876, %v1916
    %v1918 = vpop.f32.mrf.mxu0
    %v1919 = vadd.f32 %v1878, %v1918
    %v1920 = vpop.f32.mrf.mxu0
    %v1921 = vpop.f32.mrf.mxu0
    %1922 = vdwg.mxu0
    %1923 = vmatprep.subr.bf16.mxu0 %v1217
    %1924 = vmatpush1.bf16.msra.mxu0 %v1216
    %1925 = vmatprep.subr.bf16.mxu0 %v1213
    %1926 = vmatpush1.bf16.msra.mxu0 %v1212
    %1927 = vmatprep.subr.bf16.mxu0 %v1209
    %1928 = vmatpush1.bf16.msra.mxu0 %v1208
    %1929 = vmatprep.subr.bf16.mxu0 %v1205
    %1930 = vmatpush1.bf16.msra.mxu0 %v1204
    %1931 = vmatprep.subr.bf16.mxu0 %v1201
    %1932 = vmatpush1.bf16.msra.mxu0 %v1200
    %1933 = vmatprep.subr.bf16.mxu0 %v1197
    %1934 = vmatpush1.bf16.msra.mxu0 %v1196
    %1935 = vmatprep.subr.bf16.mxu0 %v1193
    %1936 = vmatpush1.bf16.msra.mxu0 %v1192
    %1937 = vmatprep.subr.bf16.mxu0 %v1189
    %1938 = vmatpush1.bf16.msra.mxu0 %v1188
    %1939 = vmatprep.subr.bf16.mxu0 %v1249
    %1940 = vmatpush2.bf16.msra.mxu0 %v1248
    %1941 = vmatprep.subr.bf16.mxu0 %v1245
    %1942 = vmatpush2.bf16.msra.mxu0 %v1244
    %1943 = vmatprep.subr.bf16.mxu0 %v1241
    %1944 = vmatpush2.bf16.msra.mxu0 %v1240
    %1945 = vmatprep.subr.bf16.mxu0 %v1237
    %1946 = vmatpush2.bf16.msra.mxu0 %v1236
    %1947 = vmatprep.subr.bf16.mxu0 %v1233
    %1948 = vmatpush2.bf16.msra.mxu0 %v1232
    %1949 = vmatprep.subr.bf16.mxu0 %v1229
    %1950 = vmatpush2.bf16.msra.mxu0 %v1228
    %1951 = vmatprep.subr.bf16.mxu0 %v1225
    %1952 = vmatpush2.bf16.msra.mxu0 %v1224
    %1953 = vmatprep.subr.bf16.mxu0 %v1221
    %1954 = vmatpush2.bf16.msra.mxu0 %v1220
    %1955 = vmatprep.mubr.bf16.mxu0 %v378
    %1956 = vmatmul.mubr.bf16.gmra.mxu0 %v377
    %v1957 = vpop.f32.mrf.mxu0
    %v1958 = vadd.f32 %v354, %v1957
    %v1959 = vpop.f32.mrf.mxu0
    %v1960 = vadd.f32 %v358, %v1959
    %v1961 = vpop.f32.mrf.mxu0
    %v1962 = vpop.f32.mrf.mxu0
    %1963 = vdwg.mxu0
    %1964 = vmatprep.subr.bf16.mxu0 %v1281
    %1965 = vmatpush1.bf16.msra.mxu0 %v1280
    %1966 = vmatprep.subr.bf16.mxu0 %v1277
    %1967 = vmatpush1.bf16.msra.mxu0 %v1276
    %1968 = vmatprep.subr.bf16.mxu0 %v1273
    %1969 = vmatpush1.bf16.msra.mxu0 %v1272
    %1970 = vmatprep.subr.bf16.mxu0 %v1269
    %1971 = vmatpush1.bf16.msra.mxu0 %v1268
    %1972 = vmatprep.subr.bf16.mxu0 %v1265
    %1973 = vmatpush1.bf16.msra.mxu0 %v1264
    %1974 = vmatprep.subr.bf16.mxu0 %v1261
    %1975 = vmatpush1.bf16.msra.mxu0 %v1260
    %1976 = vmatprep.subr.bf16.mxu0 %v1257
    %1977 = vmatpush1.bf16.msra.mxu0 %v1256
    %1978 = vmatprep.subr.bf16.mxu0 %v1253
    %1979 = vmatpush1.bf16.msra.mxu0 %v1252
    %1980 = vmatprep.subr.bf16.mxu0 %v1313
    %1981 = vmatpush2.bf16.msra.mxu0 %v1312
    %1982 = vmatprep.subr.bf16.mxu0 %v1309
    %1983 = vmatpush2.bf16.msra.mxu0 %v1308
    %1984 = vmatprep.subr.bf16.mxu0 %v1305
    %1985 = vmatpush2.bf16.msra.mxu0 %v1304
    %1986 = vmatprep.subr.bf16.mxu0 %v1301
    %1987 = vmatpush2.bf16.msra.mxu0 %v1300
    %1988 = vmatprep.subr.bf16.mxu0 %v1297
    %1989 = vmatpush2.bf16.msra.mxu0 %v1296
    %1990 = vmatprep.subr.bf16.mxu0 %v1293
    %1991 = vmatpush2.bf16.msra.mxu0 %v1292
    %1992 = vmatprep.subr.bf16.mxu0 %v1289
    %1993 = vmatpush2.bf16.msra.mxu0 %v1288
    %1994 = vmatprep.subr.bf16.mxu0 %v1285
    %1995 = vmatpush2.bf16.msra.mxu0 %v1284
    %1996 = vmatprep.mubr.bf16.mxu0 %v380
    %1997 = vmatmul.mubr.bf16.gmra.mxu0 %v379
    %v1998 = vpop.f32.mrf.mxu0
    %v1999 = vadd.f32 %v1958, %v1998
    %v2000 = vpop.f32.mrf.mxu0
    %v2001 = vadd.f32 %v1960, %v2000
    %v2002 = vpop.f32.mrf.mxu0
    %v2003 = vpop.f32.mrf.mxu0
    %2004 = vdwg.mxu0
    %2005 = vmatprep.subr.bf16.mxu0 %v1345
    %2006 = vmatpush1.bf16.msra.mxu0 %v1344
    %2007 = vmatprep.subr.bf16.mxu0 %v1341
    %2008 = vmatpush1.bf16.msra.mxu0 %v1340
    %2009 = vmatprep.subr.bf16.mxu0 %v1337
    %2010 = vmatpush1.bf16.msra.mxu0 %v1336
    %2011 = vmatprep.subr.bf16.mxu0 %v1333
    %2012 = vmatpush1.bf16.msra.mxu0 %v1332
    %2013 = vmatprep.subr.bf16.mxu0 %v1329
    %2014 = vmatpush1.bf16.msra.mxu0 %v1328
    %2015 = vmatprep.subr.bf16.mxu0 %v1325
    %2016 = vmatpush1.bf16.msra.mxu0 %v1324
    %2017 = vmatprep.subr.bf16.mxu0 %v1321
    %2018 = vmatpush1.bf16.msra.mxu0 %v1320
    %2019 = vmatprep.subr.bf16.mxu0 %v1317
    %2020 = vmatpush1.bf16.msra.mxu0 %v1316
    %2021 = vmatprep.subr.bf16.mxu0 %v1377
    %2022 = vmatpush2.bf16.msra.mxu0 %v1376
    %2023 = vmatprep.subr.bf16.mxu0 %v1373
    %2024 = vmatpush2.bf16.msra.mxu0 %v1372
    %2025 = vmatprep.subr.bf16.mxu0 %v1369
    %2026 = vmatpush2.bf16.msra.mxu0 %v1368
    %2027 = vmatprep.subr.bf16.mxu0 %v1365
    %2028 = vmatpush2.bf16.msra.mxu0 %v1364
    %2029 = vmatprep.subr.bf16.mxu0 %v1361
    %2030 = vmatpush2.bf16.msra.mxu0 %v1360
    %2031 = vmatprep.subr.bf16.mxu0 %v1357
    %2032 = vmatpush2.bf16.msra.mxu0 %v1356
    %2033 = vmatprep.subr.bf16.mxu0 %v1353
    %2034 = vmatpush2.bf16.msra.mxu0 %v1352
    %2035 = vmatprep.subr.bf16.mxu0 %v1349
    %2036 = vmatpush2.bf16.msra.mxu0 %v1348
    %2037 = vmatprep.mubr.bf16.mxu0 %v382
    %2038 = vmatmul.mubr.bf16.gmra.mxu0 %v381
    %v2039 = vpop.f32.mrf.mxu0
    %v2040 = vadd.f32 %v1999, %v2039
    %v2041 = vpop.f32.mrf.mxu0
    %v2042 = vadd.f32 %v2001, %v2041
    %v2043 = vpop.f32.mrf.mxu0
    %v2044 = vpop.f32.mrf.mxu0
    %2045 = vdwg.mxu0
    %2046 = vmatprep.subr.bf16.mxu0 %v1409
    %2047 = vmatpush1.bf16.msra.mxu0 %v1408
    %2048 = vmatprep.subr.bf16.mxu0 %v1405
    %2049 = vmatpush1.bf16.msra.mxu0 %v1404
    %2050 = vmatprep.subr.bf16.mxu0 %v1401
    %2051 = vmatpush1.bf16.msra.mxu0 %v1400
    %2052 = vmatprep.subr.bf16.mxu0 %v1397
    %2053 = vmatpush1.bf16.msra.mxu0 %v1396
    %2054 = vmatprep.subr.bf16.mxu0 %v1393
    %2055 = vmatpush1.bf16.msra.mxu0 %v1392
    %2056 = vmatprep.subr.bf16.mxu0 %v1389
    %2057 = vmatpush1.bf16.msra.mxu0 %v1388
    %2058 = vmatprep.subr.bf16.mxu0 %v1385
    %2059 = vmatpush1.bf16.msra.mxu0 %v1384
    %2060 = vmatprep.subr.bf16.mxu0 %v1381
    %2061 = vmatpush1.bf16.msra.mxu0 %v1380
    %2062 = vmatprep.subr.bf16.mxu0 %v1441
    %2063 = vmatpush2.bf16.msra.mxu0 %v1440
    %2064 = vmatprep.subr.bf16.mxu0 %v1437
    %2065 = vmatpush2.bf16.msra.mxu0 %v1436
    %2066 = vmatprep.subr.bf16.mxu0 %v1433
    %2067 = vmatpush2.bf16.msra.mxu0 %v1432
    %2068 = vmatprep.subr.bf16.mxu0 %v1429
    %2069 = vmatpush2.bf16.msra.mxu0 %v1428
    %2070 = vmatprep.subr.bf16.mxu0 %v1425
    %2071 = vmatpush2.bf16.msra.mxu0 %v1424
    %2072 = vmatprep.subr.bf16.mxu0 %v1421
    %2073 = vmatpush2.bf16.msra.mxu0 %v1420
    %2074 = vmatprep.subr.bf16.mxu0 %v1417
    %2075 = vmatpush2.bf16.msra.mxu0 %v1416
    %2076 = vmatprep.subr.bf16.mxu0 %v1413
    %2077 = vmatpush2.bf16.msra.mxu0 %v1412
    %2078 = vmatprep.mubr.bf16.mxu0 %v384
    %2079 = vmatmul.mubr.bf16.gmra.mxu0 %v383
    %v2080 = vpop.f32.mrf.mxu0
    %v2081 = vadd.f32 %v2040, %v2080
    %v2082 = vpop.f32.mrf.mxu0
    %v2083 = vadd.f32 %v2042, %v2082
    %v2084 = vpop.f32.mrf.mxu0
    %v2085 = vpop.f32.mrf.mxu0
    %2086 = vdwg.mxu0
    %2087 = vmatprep.subr.bf16.mxu0 0
    %2088 = vmatpush1.bf16.msra.mxu0 0
    %2089 = vmatprep.subr.bf16.mxu0 0
    %2090 = vmatpush1.bf16.msra.mxu0 0
    %2091 = vmatprep.subr.bf16.mxu0 0
    %2092 = vmatpush1.bf16.msra.mxu0 0
    %2093 = vmatprep.subr.bf16.mxu0 0
    %2094 = vmatpush1.bf16.msra.mxu0 0
    %2095 = vmatprep.subr.bf16.mxu0 0
    %2096 = vmatpush1.bf16.msra.mxu0 0
    %2097 = vmatprep.subr.bf16.mxu0 0
    %2098 = vmatpush1.bf16.msra.mxu0 0
    %2099 = vmatprep.subr.bf16.mxu0 %v1449
    %2100 = vmatpush1.bf16.msra.mxu0 %v1448
    %2101 = vmatprep.subr.bf16.mxu0 %v1445
    %2102 = vmatpush1.bf16.msra.mxu0 %v1444
    %2103 = vmatprep.subr.bf16.mxu0 0
    %2104 = vmatpush2.bf16.msra.mxu0 0
    %2105 = vmatprep.subr.bf16.mxu0 0
    %2106 = vmatpush2.bf16.msra.mxu0 0
    %2107 = vmatprep.subr.bf16.mxu0 0
    %2108 = vmatpush2.bf16.msra.mxu0 0
    %2109 = vmatprep.subr.bf16.mxu0 0
    %2110 = vmatpush2.bf16.msra.mxu0 0
    %2111 = vmatprep.subr.bf16.mxu0 0
    %2112 = vmatpush2.bf16.msra.mxu0 0
    %2113 = vmatprep.subr.bf16.mxu0 0
    %2114 = vmatpush2.bf16.msra.mxu0 0
    %2115 = vmatprep.subr.bf16.mxu0 0
    %2116 = vmatpush2.bf16.msra.mxu0 0
    %2117 = vmatprep.subr.bf16.mxu0 0
    %2118 = vmatpush2.bf16.msra.mxu0 0
    %2119 = vmatprep.mubr.bf16.mxu0 0
    %2120 = vmatmul.mubr.bf16.gmra.mxu0 %v1716
    %v2121 = vpop.f32.mrf.mxu0
    %v2122 = vadd.f32 %v2081, %v2121
    %v2123 = vpop.f32.mrf.mxu0
    %v2124 = vadd.f32 %v2083, %v2123
    %v2125 = vpop.f32.mrf.mxu0
    %v2126 = vpop.f32.mrf.mxu0
    %2127 = vdwg.mxu0
    %v2128 = vpack.c.bf16 %v1917, %v1917
    %v2129 = vpack.c.bf16 %v1919, %v1919
    %v2130 = vpack.c.bf16 %v2122, %v2122
    %v2131 = vpack.c.bf16 %v2124, %v2124
    %v2132 = vld [vmem:[#allocation6] sm:$0xff]
    %v2133 = vld [vmem:[#allocation6 + $0x8] sm:$0xff]
    %v2134 = vld [vmem:[#allocation6 + $0x10] sm:$0xff]
    %v2135 = vld [vmem:[#allocation6 + $0x18] sm:$0xff]
    %v2136 = vld [vmem:[#allocation6 + $0x20] sm:$0xff]
    %v2137 = vld [vmem:[#allocation6 + $0x28] sm:$0xff]
    %v2138 = vld [vmem:[#allocation6 + $0x30] sm:$0xff]
    %v2139 = vld [vmem:[#allocation6 + $0x38] sm:$0xff]
    %v2140 = vld [vmem:[#allocation6 + $0x40] sm:$0xff]
    %v2141 = vld [vmem:[#allocation6 + $0x48] sm:$0xff]
    %v2142 = vld [vmem:[#allocation6 + $0x50] sm:$0xff]
    %v2143 = vld [vmem:[#allocation6 + $0x58] sm:$0xff]
    %v2144 = vld [vmem:[#allocation6 + $0x60] sm:$0xff]
    %v2145 = vld [vmem:[#allocation6 + $0x68] sm:$0xff]
    %v2146 = vld [vmem:[#allocation6 + $0x70] sm:$0xff]
    %v2147 = vld [vmem:[#allocation6 + $0x78] sm:$0xff]
    %v2148 = vld [vmem:[#allocation6 + $0x80] sm:$0xff]
    %v2149 = vld [vmem:[#allocation6 + $0x88] sm:$0xff]
    %v2150 = vld [vmem:[#allocation6 + $0x90] sm:$0xff]
    %v2151 = vld [vmem:[#allocation6 + $0x98] sm:$0xff]
    %v2152 = vld [vmem:[#allocation6 + $0xa0] sm:$0xff]
    %v2153 = vld [vmem:[#allocation6 + $0xa8] sm:$0xff]
    %v2154 = vld [vmem:[#allocation6 + $0xb0] sm:$0xff]
    %v2155 = vld [vmem:[#allocation6 + $0xb8] sm:$0xff]
    %v2156 = vld [vmem:[#allocation6 + $0xc0] sm:$0xff]
    %v2157 = vld [vmem:[#allocation6 + $0xc8] sm:$0xff]
    %v2158 = vld [vmem:[#allocation6 + $0xd0] sm:$0xff]
    %v2159 = vld [vmem:[#allocation6 + $0xd8] sm:$0xff]
    %v2160 = vld [vmem:[#allocation6 + $0xe0] sm:$0xff]
    %v2161 = vld [vmem:[#allocation6 + $0xe8] sm:$0xff]
    %v2162 = vld [vmem:[#allocation6 + $0xf0] sm:$0xff]
    %v2163 = vld [vmem:[#allocation6 + $0xf8] sm:$0xff]
    %v2164 = vld [vmem:[#allocation6 + $0x100] sm:$0xff]
    %v2165 = vld [vmem:[#allocation6 + $0x108] sm:$0xff]
    %v2166 = vld [vmem:[#allocation6 + $0x110] sm:$0xff]
    %v2167 = vld [vmem:[#allocation6 + $0x118] sm:$0xff]
    %v2168 = vld [vmem:[#allocation6 + $0x120] sm:$0xff]
    %v2169 = vld [vmem:[#allocation6 + $0x128] sm:$0xff]
    %v2170 = vld [vmem:[#allocation6 + $0x130] sm:$0xff]
    %v2171 = vld [vmem:[#allocation6 + $0x138] sm:$0xff]
    %v2172 = vld [vmem:[#allocation6 + $0x140] sm:$0xff]
    %v2173 = vld [vmem:[#allocation6 + $0x148] sm:$0xff]
    %v2174 = vld [vmem:[#allocation6 + $0x150] sm:$0xff]
    %v2175 = vld [vmem:[#allocation6 + $0x158] sm:$0xff]
    %v2176 = vld [vmem:[#allocation6 + $0x160] sm:$0xff]
    %v2177 = vld [vmem:[#allocation6 + $0x168] sm:$0xff]
    %v2178 = vld [vmem:[#allocation6 + $0x170] sm:$0xff]
    %v2179 = vld [vmem:[#allocation6 + $0x178] sm:$0xff]
    %v2180 = vld [vmem:[#allocation6 + $0x180] sm:$0xff]
    %v2181 = vld [vmem:[#allocation6 + $0x188] sm:$0xff]
    %v2182 = vld [vmem:[#allocation6 + $0x190] sm:$0xff]
    %v2183 = vld [vmem:[#allocation6 + $0x198] sm:$0xff]
    %v2184 = vld [vmem:[#allocation6 + $0x1a0] sm:$0xff]
    %v2185 = vld [vmem:[#allocation6 + $0x1a8] sm:$0xff]
    %v2186 = vld [vmem:[#allocation6 + $0x1b0] sm:$0xff]
    %v2187 = vld [vmem:[#allocation6 + $0x1b8] sm:$0xff]
    %v2188 = vld [vmem:[#allocation6 + $0x1c0] sm:$0xff]
    %v2189 = vld [vmem:[#allocation6 + $0x1c8] sm:$0xff]
    %v2190 = vld [vmem:[#allocation6 + $0x1d0] sm:$0xff]
    %v2191 = vld [vmem:[#allocation6 + $0x1d8] sm:$0xff]
    %v2192 = vld [vmem:[#allocation6 + $0x1e0] sm:$0xff]
    %v2193 = vld [vmem:[#allocation6 + $0x1e8] sm:$0xff]
    %v2194 = vld [vmem:[#allocation6 + $0x1f0] sm:$0xff]
    %v2195 = vld [vmem:[#allocation6 + $0x1f8] sm:$0xff]
    %v2196 = vld [vmem:[#allocation7] sm:$0x3]
    %v2198 = vlaneseq
    %v2199 = vshrl.u32 %v2198, 7
    %v2200 = vsub.s32 0, %v2199
    %v2201 = vrot.slane %v2196, %v2200
    %v2202 = vlaneseq
    %v2203 = vshrl.u32 %v2202, 7
    %v2204 = vsub.s32 1, %v2203
    %v2205 = vrot.slane %v2196, %v2204
    %v2272 = vunpack.c.l.b16 %v2132
    %v2273 = vunpack.c.h.b16 %v2132
    %v2274 = vunpack.c.l.b16 %v2133
    %v2275 = vunpack.c.h.b16 %v2133
    %v2276 = vunpack.c.l.b16 %v2134
    %v2277 = vunpack.c.h.b16 %v2134
    %v2278 = vunpack.c.l.b16 %v2135
    %v2279 = vunpack.c.h.b16 %v2135
    %v2280 = vunpack.c.l.b16 %v2136
    %v2281 = vunpack.c.h.b16 %v2136
    %v2282 = vunpack.c.l.b16 %v2137
    %v2283 = vunpack.c.h.b16 %v2137
    %v2284 = vunpack.c.l.b16 %v2138
    %v2285 = vunpack.c.h.b16 %v2138
    %v2286 = vunpack.c.l.b16 %v2139
    %v2287 = vunpack.c.h.b16 %v2139
    %v2288 = vunpack.c.l.b16 %v2140
    %v2289 = vunpack.c.h.b16 %v2140
    %v2290 = vunpack.c.l.b16 %v2141
    %v2291 = vunpack.c.h.b16 %v2141
    %v2292 = vunpack.c.l.b16 %v2142
    %v2293 = vunpack.c.h.b16 %v2142
    %v2294 = vunpack.c.l.b16 %v2143
    %v2295 = vunpack.c.h.b16 %v2143
    %v2296 = vunpack.c.l.b16 %v2144
    %v2297 = vunpack.c.h.b16 %v2144
    %v2298 = vunpack.c.l.b16 %v2145
    %v2299 = vunpack.c.h.b16 %v2145
    %v2300 = vunpack.c.l.b16 %v2146
    %v2301 = vunpack.c.h.b16 %v2146
    %v2302 = vunpack.c.l.b16 %v2147
    %v2303 = vunpack.c.h.b16 %v2147
    %v2304 = vunpack.c.l.b16 %v2148
    %v2305 = vunpack.c.h.b16 %v2148
    %v2306 = vunpack.c.l.b16 %v2149
    %v2307 = vunpack.c.h.b16 %v2149
    %v2308 = vunpack.c.l.b16 %v2150
    %v2309 = vunpack.c.h.b16 %v2150
    %v2310 = vunpack.c.l.b16 %v2151
    %v2311 = vunpack.c.h.b16 %v2151
    %v2312 = vunpack.c.l.b16 %v2152
    %v2313 = vunpack.c.h.b16 %v2152
    %v2314 = vunpack.c.l.b16 %v2153
    %v2315 = vunpack.c.h.b16 %v2153
    %v2316 = vunpack.c.l.b16 %v2154
    %v2317 = vunpack.c.h.b16 %v2154
    %v2318 = vunpack.c.l.b16 %v2155
    %v2319 = vunpack.c.h.b16 %v2155
    %v2320 = vunpack.c.l.b16 %v2156
    %v2321 = vunpack.c.h.b16 %v2156
    %v2322 = vunpack.c.l.b16 %v2157
    %v2323 = vunpack.c.h.b16 %v2157
    %v2324 = vunpack.c.l.b16 %v2158
    %v2325 = vunpack.c.h.b16 %v2158
    %v2326 = vunpack.c.l.b16 %v2159
    %v2327 = vunpack.c.h.b16 %v2159
    %v2328 = vunpack.c.l.b16 %v2160
    %v2329 = vunpack.c.h.b16 %v2160
    %v2330 = vunpack.c.l.b16 %v2161
    %v2331 = vunpack.c.h.b16 %v2161
    %v2332 = vunpack.c.l.b16 %v2162
    %v2333 = vunpack.c.h.b16 %v2162
    %v2334 = vunpack.c.l.b16 %v2163
    %v2335 = vunpack.c.h.b16 %v2163
    %v2336 = vunpack.c.l.b16 %v2164
    %v2337 = vunpack.c.h.b16 %v2164
    %v2338 = vunpack.c.l.b16 %v2165
    %v2339 = vunpack.c.h.b16 %v2165
    %v2340 = vunpack.c.l.b16 %v2166
    %v2341 = vunpack.c.h.b16 %v2166
    %v2342 = vunpack.c.l.b16 %v2167
    %v2343 = vunpack.c.h.b16 %v2167
    %v2344 = vunpack.c.l.b16 %v2168
    %v2345 = vunpack.c.h.b16 %v2168
    %v2346 = vunpack.c.l.b16 %v2169
    %v2347 = vunpack.c.h.b16 %v2169
    %v2348 = vunpack.c.l.b16 %v2170
    %v2349 = vunpack.c.h.b16 %v2170
    %v2350 = vunpack.c.l.b16 %v2171
    %v2351 = vunpack.c.h.b16 %v2171
    %v2352 = vunpack.c.l.b16 %v2172
    %v2353 = vunpack.c.h.b16 %v2172
    %v2354 = vunpack.c.l.b16 %v2173
    %v2355 = vunpack.c.h.b16 %v2173
    %v2356 = vunpack.c.l.b16 %v2174
    %v2357 = vunpack.c.h.b16 %v2174
    %v2358 = vunpack.c.l.b16 %v2175
    %v2359 = vunpack.c.h.b16 %v2175
    %v2360 = vunpack.c.l.b16 %v2176
    %v2361 = vunpack.c.h.b16 %v2176
    %v2362 = vunpack.c.l.b16 %v2177
    %v2363 = vunpack.c.h.b16 %v2177
    %v2364 = vunpack.c.l.b16 %v2178
    %v2365 = vunpack.c.h.b16 %v2178
    %v2366 = vunpack.c.l.b16 %v2179
    %v2367 = vunpack.c.h.b16 %v2179
    %v2368 = vunpack.c.l.b16 %v2180
    %v2369 = vunpack.c.h.b16 %v2180
    %v2370 = vunpack.c.l.b16 %v2181
    %v2371 = vunpack.c.h.b16 %v2181
    %v2372 = vunpack.c.l.b16 %v2182
    %v2373 = vunpack.c.h.b16 %v2182
    %v2374 = vunpack.c.l.b16 %v2183
    %v2375 = vunpack.c.h.b16 %v2183
    %v2376 = vunpack.c.l.b16 %v2184
    %v2377 = vunpack.c.h.b16 %v2184
    %v2378 = vunpack.c.l.b16 %v2185
    %v2379 = vunpack.c.h.b16 %v2185
    %v2380 = vunpack.c.l.b16 %v2186
    %v2381 = vunpack.c.h.b16 %v2186
    %v2382 = vunpack.c.l.b16 %v2187
    %v2383 = vunpack.c.h.b16 %v2187
    %v2384 = vunpack.c.l.b16 %v2188
    %v2385 = vunpack.c.h.b16 %v2188
    %v2386 = vunpack.c.l.b16 %v2189
    %v2387 = vunpack.c.h.b16 %v2189
    %v2388 = vunpack.c.l.b16 %v2190
    %v2389 = vunpack.c.h.b16 %v2190
    %v2390 = vunpack.c.l.b16 %v2191
    %v2391 = vunpack.c.h.b16 %v2191
    %v2392 = vunpack.c.l.b16 %v2192
    %v2393 = vunpack.c.h.b16 %v2192
    %v2394 = vunpack.c.l.b16 %v2193
    %v2395 = vunpack.c.h.b16 %v2193
    %v2396 = vunpack.c.l.b16 %v2194
    %v2397 = vunpack.c.h.b16 %v2194
    %v2398 = vunpack.c.l.b16 %v2195
    %v2399 = vunpack.c.h.b16 %v2195
    %v2400 = vpack.c.b16 %v2274, %v2272
    %v2401 = vpack.c.b16 %v2275, %v2273
    %v2402 = vpack.c.b16 %v2278, %v2276
    %v2403 = vpack.c.b16 %v2279, %v2277
    %v2404 = vpack.c.b16 %v2282, %v2280
    %v2405 = vpack.c.b16 %v2283, %v2281
    %v2406 = vpack.c.b16 %v2286, %v2284
    %v2407 = vpack.c.b16 %v2287, %v2285
    %v2408 = vpack.c.b16 %v2290, %v2288
    %v2409 = vpack.c.b16 %v2291, %v2289
    %v2410 = vpack.c.b16 %v2294, %v2292
    %v2411 = vpack.c.b16 %v2295, %v2293
    %v2412 = vpack.c.b16 %v2298, %v2296
    %v2413 = vpack.c.b16 %v2299, %v2297
    %v2414 = vpack.c.b16 %v2302, %v2300
    %v2415 = vpack.c.b16 %v2303, %v2301
    %v2416 = vpack.c.b16 %v2306, %v2304
    %v2417 = vpack.c.b16 %v2307, %v2305
    %v2418 = vpack.c.b16 %v2310, %v2308
    %v2419 = vpack.c.b16 %v2311, %v2309
    %v2420 = vpack.c.b16 %v2314, %v2312
    %v2421 = vpack.c.b16 %v2315, %v2313
    %v2422 = vpack.c.b16 %v2318, %v2316
    %v2423 = vpack.c.b16 %v2319, %v2317
    %v2424 = vpack.c.b16 %v2322, %v2320
    %v2425 = vpack.c.b16 %v2323, %v2321
    %v2426 = vpack.c.b16 %v2326, %v2324
    %v2427 = vpack.c.b16 %v2327, %v2325
    %v2428 = vpack.c.b16 %v2330, %v2328
    %v2429 = vpack.c.b16 %v2331, %v2329
    %v2430 = vpack.c.b16 %v2334, %v2332
    %v2431 = vpack.c.b16 %v2335, %v2333
    %v2432 = vpack.c.b16 %v2338, %v2336
    %v2433 = vpack.c.b16 %v2339, %v2337
    %v2434 = vpack.c.b16 %v2342, %v2340
    %v2435 = vpack.c.b16 %v2343, %v2341
    %v2436 = vpack.c.b16 %v2346, %v2344
    %v2437 = vpack.c.b16 %v2347, %v2345
    %v2438 = vpack.c.b16 %v2350, %v2348
    %v2439 = vpack.c.b16 %v2351, %v2349
    %v2440 = vpack.c.b16 %v2354, %v2352
    %v2441 = vpack.c.b16 %v2355, %v2353
    %v2442 = vpack.c.b16 %v2358, %v2356
    %v2443 = vpack.c.b16 %v2359, %v2357
    %v2444 = vpack.c.b16 %v2362, %v2360
    %v2445 = vpack.c.b16 %v2363, %v2361
    %v2446 = vpack.c.b16 %v2366, %v2364
    %v2447 = vpack.c.b16 %v2367, %v2365
    %v2448 = vpack.c.b16 %v2370, %v2368
    %v2449 = vpack.c.b16 %v2371, %v2369
    %v2450 = vpack.c.b16 %v2374, %v2372
    %v2451 = vpack.c.b16 %v2375, %v2373
    %v2452 = vpack.c.b16 %v2378, %v2376
    %v2453 = vpack.c.b16 %v2379, %v2377
    %v2454 = vpack.c.b16 %v2382, %v2380
    %v2455 = vpack.c.b16 %v2383, %v2381
    %v2456 = vpack.c.b16 %v2386, %v2384
    %v2457 = vpack.c.b16 %v2387, %v2385
    %v2458 = vpack.c.b16 %v2390, %v2388
    %v2459 = vpack.c.b16 %v2391, %v2389
    %v2460 = vpack.c.b16 %v2394, %v2392
    %v2461 = vpack.c.b16 %v2395, %v2393
    %v2462 = vpack.c.b16 %v2398, %v2396
    %v2463 = vpack.c.b16 %v2399, %v2397
    %2528 = vmatprep.subr.bf16.mxu0 %v2415
    %2529 = vmatpush1.bf16.msra.mxu0 %v2414
    %2530 = vmatprep.subr.bf16.mxu0 %v2413
    %2531 = vmatpush1.bf16.msra.mxu0 %v2412
    %2532 = vmatprep.subr.bf16.mxu0 %v2411
    %2533 = vmatpush1.bf16.msra.mxu0 %v2410
    %2534 = vmatprep.subr.bf16.mxu0 %v2409
    %2535 = vmatpush1.bf16.msra.mxu0 %v2408
    %2536 = vmatprep.subr.bf16.mxu0 %v2407
    %2537 = vmatpush1.bf16.msra.mxu0 %v2406
    %2538 = vmatprep.subr.bf16.mxu0 %v2405
    %2539 = vmatpush1.bf16.msra.mxu0 %v2404
    %2540 = vmatprep.subr.bf16.mxu0 %v2403
    %2541 = vmatpush1.bf16.msra.mxu0 %v2402
    %2542 = vmatprep.subr.bf16.mxu0 %v2401
    %2543 = vmatpush1.bf16.msra.mxu0 %v2400
    %2544 = vmatprep.subr.bf16.mxu0 %v2431
    %2545 = vmatpush2.bf16.msra.mxu0 %v2430
    %2546 = vmatprep.subr.bf16.mxu0 %v2429
    %2547 = vmatpush2.bf16.msra.mxu0 %v2428
    %2548 = vmatprep.subr.bf16.mxu0 %v2427
    %2549 = vmatpush2.bf16.msra.mxu0 %v2426
    %2550 = vmatprep.subr.bf16.mxu0 %v2425
    %2551 = vmatpush2.bf16.msra.mxu0 %v2424
    %2552 = vmatprep.subr.bf16.mxu0 %v2423
    %2553 = vmatpush2.bf16.msra.mxu0 %v2422
    %2554 = vmatprep.subr.bf16.mxu0 %v2421
    %2555 = vmatpush2.bf16.msra.mxu0 %v2420
    %2556 = vmatprep.subr.bf16.mxu0 %v2419
    %2557 = vmatpush2.bf16.msra.mxu0 %v2418
    %2558 = vmatprep.subr.bf16.mxu0 %v2417
    %2559 = vmatpush2.bf16.msra.mxu0 %v2416
    %2560 = vmatprep.mubr.bf16.mxu0 %v2129
    %2561 = vmatmul.mubr.bf16.gmra.mxu0 %v2128
    %v2562 = vpop.f32.mrf.mxu0
    %v2563 = vadd.f32 %v2201, %v2562
    %v2564 = vpop.f32.mrf.mxu0
    %v2565 = vadd.f32 %v2205, %v2564
    %v2566 = vpop.f32.mrf.mxu0
    %v2567 = vpop.f32.mrf.mxu0
    %2568 = vdwg.mxu0
    %2569 = vmatprep.subr.bf16.mxu0 %v2447
    %2570 = vmatpush1.bf16.msra.mxu0 %v2446
    %2571 = vmatprep.subr.bf16.mxu0 %v2445
    %2572 = vmatpush1.bf16.msra.mxu0 %v2444
    %2573 = vmatprep.subr.bf16.mxu0 %v2443
    %2574 = vmatpush1.bf16.msra.mxu0 %v2442
    %2575 = vmatprep.subr.bf16.mxu0 %v2441
    %2576 = vmatpush1.bf16.msra.mxu0 %v2440
    %2577 = vmatprep.subr.bf16.mxu0 %v2439
    %2578 = vmatpush1.bf16.msra.mxu0 %v2438
    %2579 = vmatprep.subr.bf16.mxu0 %v2437
    %2580 = vmatpush1.bf16.msra.mxu0 %v2436
    %2581 = vmatprep.subr.bf16.mxu0 %v2435
    %2582 = vmatpush1.bf16.msra.mxu0 %v2434
    %2583 = vmatprep.subr.bf16.mxu0 %v2433
    %2584 = vmatpush1.bf16.msra.mxu0 %v2432
    %2585 = vmatprep.subr.bf16.mxu0 %v2463
    %2586 = vmatpush2.bf16.msra.mxu0 %v2462
    %2587 = vmatprep.subr.bf16.mxu0 %v2461
    %2588 = vmatpush2.bf16.msra.mxu0 %v2460
    %2589 = vmatprep.subr.bf16.mxu0 %v2459
    %2590 = vmatpush2.bf16.msra.mxu0 %v2458
    %2591 = vmatprep.subr.bf16.mxu0 %v2457
    %2592 = vmatpush2.bf16.msra.mxu0 %v2456
    %2593 = vmatprep.subr.bf16.mxu0 %v2455
    %2594 = vmatpush2.bf16.msra.mxu0 %v2454
    %2595 = vmatprep.subr.bf16.mxu0 %v2453
    %2596 = vmatpush2.bf16.msra.mxu0 %v2452
    %2597 = vmatprep.subr.bf16.mxu0 %v2451
    %2598 = vmatpush2.bf16.msra.mxu0 %v2450
    %2599 = vmatprep.subr.bf16.mxu0 %v2449
    %2600 = vmatpush2.bf16.msra.mxu0 %v2448
    %2601 = vmatprep.mubr.bf16.mxu0 %v2131
    %2602 = vmatmul.mubr.bf16.gmra.mxu0 %v2130
    %v2603 = vpop.f32.mrf.mxu0
    %v2604 = vadd.f32 %v2563, %v2603
    %v2605 = vpop.f32.mrf.mxu0
    %v2606 = vadd.f32 %v2565, %v2605
    %v2607 = vpop.f32.mrf.mxu0
    %v2608 = vpop.f32.mrf.mxu0
    %2609 = vdwg.mxu0
    %2610 = vst [vmem:[%s5] sm:$0xff] %v2604
    %2611 = vst [vmem:[%s5 + $0x8] sm:$0xff] %v2606
    // Predicated region
    $region38: #{multimodal_forward.1} parent=1 // pred_check
      _
    $region39: #{multimodal_forward.1} parent=1 // pred_check_branch
      %2613 = sbr.rel (0) target = $region41
    $region40: #{multimodal_forward.1} parent=1 // pred_region
      _
    $region41: #{multimodal_forward.1} parent=1 // pred_fallthru
      _
    // Predicated region
    $region42: #{multimodal_forward.1} parent=1 // pred_check
      _
    $region43: #{multimodal_forward.1} parent=1 // pred_check_branch
      %2615 = sbr.rel (0) target = $region45
    $region44: #{multimodal_forward.1} parent=1 // pred_region
      _
    $region45: #{multimodal_forward.1} parent=1 // pred_fallthru
      _
    %2616 = vsyncpa [#allocation3], 1
    %2617 = vsyncpa [#allocation5], 1
    %2618 = vsyncpa [#allocation8], 1

</llo_original>
